<compile_context>
chip_gen: v7x
topology: tpu7x:2x2x1
jax: 0.10.0
libtpu: 0.0.40
codegen_flags: <defaults>
</compile_context>

<pallas_src>
import functools

import jax
import jax.numpy as jnp
from jax.experimental import pallas as pl
from jax.experimental.pallas import tpu as pltpu

_SUBLANE = 8
_LANE = 128


def _ffn_fused_kernel(x_ref, *refs, bias_slices):
    """Whole FFN on one batch tile: chained dot+bias(+ReLU), all in VMEM.

    refs = (w_0, ..., w_{L-1}, b_all, out).  bias_slices is a static tuple of
    (lane_offset, out_width) per layer into the packed bias buffer.
    """
    *w_refs, b_all_ref, o_ref = refs
    n_layers = len(w_refs)
    h = x_ref[...]                                # (tm, Din) bf16 stream
    for i, w_ref in enumerate(w_refs):            # unrolled at trace time
        off, dout = bias_slices[i]
        # bf16 x bf16 -> f32 accumulation on the MXU.
        acc = jnp.dot(h, w_ref[...], preferred_element_type=jnp.float32)
        acc = acc + b_all_ref[:, off:off + dout]  # (1, dout) f32 bias bcast
        if i < n_layers - 1:
            # Downcast first, then ReLU (commutes with the cast): ReLU runs on
            # 2x-packed bf16 vregs and the next dot consumes bf16 anyway.
            h = jnp.maximum(acc.astype(w_ref.dtype), 0)
        else:
            o_ref[...] = acc.astype(o_ref.dtype)


def _resident_spec(shape):
    """Constant-block-index spec (VMEM-resident across the batch grid).

    Single-buffered when this jax version supports per-operand pipeline_mode;
    otherwise falls back to the default (2x VMEM, functionally identical).
    """
    idx_map = lambda i: (0,) * len(shape)
    try:
        return pl.BlockSpec(shape, idx_map, pipeline_mode=pl.Buffered(1))
    except TypeError:
        return pl.BlockSpec(shape, idx_map)


def ffn_forward(x_nchw, params, *, tm_max: int = 256):
    """Flatten NCHW input and run the fused FFN kernel.

    params: list of (w, b) with w: (din, dout) bf16 (transposed vs. PyTorch's
    (out, in)), b: (1, dout) f32.  Returns f32 logits of shape (B, Dout).
    """
    B = x_nchw.shape[0]
    # nn.Flatten(), then cast the activation stream to bf16: halves the only
    # per-grid-step HBM DMA and removes the per-tile f32->bf16 cast in-kernel.
    x = x_nchw.reshape(B, -1).astype(jnp.bfloat16)
    Din = x.shape[1]
    Dout = params[-1][0].shape[1]

    # --- Pad the final layer to a lane-dense output width (multiple of 128).
    Dout_p = pl.cdiv(Dout, _LANE) * _LANE
    padded_params = list(params[:-1])
    w_last, b_last = params[-1]
    if Dout_p != Dout:
        w_last = jnp.pad(w_last, ((0, 0), (0, Dout_p - Dout)))
        b_last = jnp.pad(b_last, ((0, 0), (0, Dout_p - Dout)))
    padded_params.append((w_last, b_last))

    # --- Pack all biases into one lane-dense f32 buffer (1 prime DMA, not 4).
    bias_segments, bias_slices, off = [], [], 0
    for (w, b) in padded_params:
        dout = w.shape[1]
        seg = pl.cdiv(dout, _LANE) * _LANE        # keep offsets lane-aligned
        bias_segments.append(jnp.pad(b.astype(jnp.float32),
                                     ((0, 0), (0, seg - dout))))
        bias_slices.append((off, dout))
        off += seg
    b_all = jnp.concatenate(bias_segments, axis=1)

    # --- Pad batch to a sublane multiple and pick the batch tile.
    Bp = pl.cdiv(B, _SUBLANE) * _SUBLANE
    tm = min(tm_max, Bp)
    # Prefer >=2 batch tiles when there is enough batch to split: the
    # "parallel" axis only uses v7x's 2nd TensorCore when the grid has >=2
    # steps (no-op for the B=2 demo where grid=(1,)).
    if Bp >= 2 * _SUBLANE and Bp // tm < 2:
        tm = pl.cdiv(Bp, 2 * _SUBLANE) * _SUBLANE
    Bp = pl.cdiv(Bp, tm) * tm
    if Bp != B:
        x = jnp.pad(x, ((0, Bp - B), (0, 0)))

    grid = (Bp // tm,)

    # Input tile streams along the batch grid; weights/bias are constant-index
    # (VMEM-resident, single-buffered).
    in_specs = [pl.BlockSpec((tm, Din), lambda i: (i, 0))]
    flat_args = [x]
    for (w, _) in padded_params:
        in_specs.append(_resident_spec(w.shape))
        flat_args.append(w)
    in_specs.append(_resident_spec(b_all.shape))
    flat_args.append(b_all)

    kernel = functools.partial(_ffn_fused_kernel,
                               bias_slices=tuple(bias_slices))

    out = pl.pallas_call(
        kernel,
        out_shape=jax.ShapeDtypeStruct((Bp, Dout_p), jnp.float32),
        grid=grid,
        in_specs=in_specs,
        out_specs=pl.BlockSpec((tm, Dout_p), lambda i: (i, 0)),
        compiler_params=pltpu.CompilerParams(
            dimension_semantics=("parallel",),
        ),
    )(*flat_args)

    # Strip batch / lane padding.  Output stays f32 to match the PyTorch
    # module's dtype semantics.
    return out[:B, :Dout]
    # TODO(synk): if hidden widths grow so the (single-buffered) weights no
    # longer fit VMEM (esp. v7x's 64 MiB), add a K/N-tiled grid with an f32
    # accumulator and pl.when init/finalize, and set vmem_limit_bytes.


def init_ffn_params(key, in_features: int, hidden_layers, out_features: int,
                    weight_dtype=jnp.bfloat16):
    """Deterministic init matching PyTorch Linear's U(-1/sqrt(in), 1/sqrt(in)).

    Weights are stored in bf16 (MXU-native, halves weight DMA); biases stay
    f32 since they are added to the f32 accumulator.
    """
    dims = [in_features] + list(hidden_layers) + [out_features]
    params = []
    for li, (din, dout) in enumerate(zip(dims[:-1], dims[1:])):
        kw, kb, key = jax.random.split(jax.random.fold_in(key, li), 3)
        bound = 1.0 / jnp.sqrt(jnp.float32(din))
        w = jax.random.uniform(kw, (din, dout), jnp.float32, -bound, bound)
        b = jax.random.uniform(kb, (1, dout), jnp.float32, -bound, bound)
        params.append((w.astype(weight_dtype), b))
    return params


if __name__ == "__main__":
    key = jax.random.PRNGKey(0)
    kx, kp = jax.random.split(key)

    # Input consistent with an image-like NCHW tensor that gets flattened.
    B, C, H, W = 2, 4, 16, 16  # -> in_features = 1024
    x = jax.random.normal(kx, (B, C, H, W), dtype=jnp.float32)

    hidden_layers = [512, 256, 128]
    out_features = 10
    params = init_ffn_params(kp, C * H * W, hidden_layers, out_features)

    out = ffn_forward(x, params)
    out = jax.block_until_ready(out)

    assert out.shape == (B, out_features), out.shape
    assert out.dtype == jnp.float32

    # Cross-check against a plain-JAX reference using the SAME bf16
    # weight/activation quantization and f32 accumulation, so the check
    # isolates kernel correctness.
    ref = x.reshape(B, -1).astype(jnp.bfloat16)
    for i, (w, b) in enumerate(params):
        acc = jnp.dot(ref, w, preferred_element_type=jnp.float32) + b
        if i < len(params) - 1:
            ref = jnp.maximum(acc.astype(jnp.bfloat16), 0)
        else:
            ref = acc
    assert jnp.allclose(out, ref, atol=2e-2, rtol=2e-2), (
        float(jnp.max(jnp.abs(out - ref))))

    print("KERNEL_OK")
</pallas_src>

<mosaic_0001>
module attributes {stable_mosaic.version = 11 : i64} {
  func.func @_ffn_fused_kernel(%arg0: i32, %arg1: memref<8x1024xbf16, #tpu.memory_space<vmem>>, %arg2: memref<1024x512xbf16, #tpu.memory_space<vmem>>, %arg3: memref<512x256xbf16, #tpu.memory_space<vmem>>, %arg4: memref<256x128xbf16, #tpu.memory_space<vmem>>, %arg5: memref<128x128xbf16, #tpu.memory_space<vmem>>, %arg6: memref<1x1024xf32, #tpu.memory_space<vmem>>, %arg7: memref<8x128xf32, #tpu.memory_space<vmem>>) attributes {dimension_semantics = [#tpu.dimension_semantics<parallel>], iteration_bounds = array<i64: 1>, scalar_prefetch = 0 : i64, scratch_operands = 0 : i64, tpu.core_type = #tpu.core_type<tc>, window_params = [{transform_indices = @transform_0, window_bounds = array<i64: 8, 1024>}, {pipeline_mode = #tpu.pipeline_mode<synchronous>, transform_indices = @transform_1, window_bounds = array<i64: 1024, 512>}, {pipeline_mode = #tpu.pipeline_mode<synchronous>, transform_indices = @transform_2, window_bounds = array<i64: 512, 256>}, {pipeline_mode = #tpu.pipeline_mode<synchronous>, transform_indices = @transform_3, window_bounds = array<i64: 256, 128>}, {pipeline_mode = #tpu.pipeline_mode<synchronous>, transform_indices = @transform_4, window_bounds = array<i64: 128, 128>}, {pipeline_mode = #tpu.pipeline_mode<synchronous>, transform_indices = @transform_5, window_bounds = array<i64: 1, 1024>}, {transform_indices = @transform_6, window_bounds = array<i64: 8, 128>}]} {
    %c0 = arith.constant 0 : index
    %c0_0 = arith.constant 0 : index
    %0 = vector.load %arg1[%c0, %c0_0] : memref<8x1024xbf16, #tpu.memory_space<vmem>>, vector<8x1024xbf16>
    %c0_1 = arith.constant 0 : index
    %c0_2 = arith.constant 0 : index
    %1 = vector.load %arg2[%c0_1, %c0_2] : memref<1024x512xbf16, #tpu.memory_space<vmem>>, vector<1024x512xbf16>
    %cst = arith.constant dense<0.000000e+00> : vector<8x512xf32>
    %2 = tpu.matmul %0, %1, %cst {dimension_numbers = #tpu.dot_dimension_numbers<[1], [0], [0], [1], [0, 0, 1, 1], [], []>} : vector<8x1024xbf16>, vector<1024x512xbf16>, vector<8x512xf32> -> vector<8x512xf32>
    %c0_3 = arith.constant 0 : index
    %c0_4 = arith.constant 0 : index
    %3 = vector.load %arg6[%c0_3, %c0_4] : memref<1x1024xf32, #tpu.memory_space<vmem>>, vector<1x512xf32>
    %4 = vector.broadcast %3 : vector<1x512xf32> to vector<8x512xf32>
    %5 = arith.addf %2, %4 : vector<8x512xf32>
    %6 = arith.truncf %5 : vector<8x512xf32> to vector<8x512xbf16>
    %cst_5 = arith.constant 0.000000e+00 : bf16
    %7 = vector.broadcast %cst_5 : bf16 to vector<8x512xbf16>
    %8 = arith.maximumf %6, %7 : vector<8x512xbf16>
    %c0_6 = arith.constant 0 : index
    %c0_7 = arith.constant 0 : index
    %9 = vector.load %arg3[%c0_6, %c0_7] : memref<512x256xbf16, #tpu.memory_space<vmem>>, vector<512x256xbf16>
    %cst_8 = arith.constant dense<0.000000e+00> : vector<8x256xf32>
    %10 = tpu.matmul %8, %9, %cst_8 {dimension_numbers = #tpu.dot_dimension_numbers<[1], [0], [0], [1], [0, 0, 1, 1], [], []>} : vector<8x512xbf16>, vector<512x256xbf16>, vector<8x256xf32> -> vector<8x256xf32>
    %c0_9 = arith.constant 0 : index
    %c512 = arith.constant 512 : index
    %11 = vector.load %arg6[%c0_9, %c512] : memref<1x1024xf32, #tpu.memory_space<vmem>>, vector<1x256xf32>
    %12 = vector.broadcast %11 : vector<1x256xf32> to vector<8x256xf32>
    %13 = arith.addf %10, %12 : vector<8x256xf32>
    %14 = arith.truncf %13 : vector<8x256xf32> to vector<8x256xbf16>
    %cst_10 = arith.constant 0.000000e+00 : bf16
    %15 = vector.broadcast %cst_10 : bf16 to vector<8x256xbf16>
    %16 = arith.maximumf %14, %15 : vector<8x256xbf16>
    %c0_11 = arith.constant 0 : index
    %c0_12 = arith.constant 0 : index
    %17 = vector.load %arg4[%c0_11, %c0_12] : memref<256x128xbf16, #tpu.memory_space<vmem>>, vector<256x128xbf16>
    %cst_13 = arith.constant dense<0.000000e+00> : vector<8x128xf32>
    %18 = tpu.matmul %16, %17, %cst_13 {dimension_numbers = #tpu.dot_dimension_numbers<[1], [0], [0], [1], [0, 0, 1, 1], [], []>} : vector<8x256xbf16>, vector<256x128xbf16>, vector<8x128xf32> -> vector<8x128xf32>
    %c0_14 = arith.constant 0 : index
    %c768 = arith.constant 768 : index
    %19 = vector.load %arg6[%c0_14, %c768] : memref<1x1024xf32, #tpu.memory_space<vmem>>, vector<1x128xf32>
    %20 = vector.broadcast %19 : vector<1x128xf32> to vector<8x128xf32>
    %21 = arith.addf %18, %20 : vector<8x128xf32>
    %22 = arith.truncf %21 : vector<8x128xf32> to vector<8x128xbf16>
    %cst_15 = arith.constant 0.000000e+00 : bf16
    %23 = vector.broadcast %cst_15 : bf16 to vector<8x128xbf16>
    %24 = arith.maximumf %22, %23 : vector<8x128xbf16>
    %c0_16 = arith.constant 0 : index
    %c0_17 = arith.constant 0 : index
    %25 = vector.load %arg5[%c0_16, %c0_17] : memref<128x128xbf16, #tpu.memory_space<vmem>>, vector<128x128xbf16>
    %cst_18 = arith.constant dense<0.000000e+00> : vector<8x128xf32>
    %26 = tpu.matmul %24, %25, %cst_18 {dimension_numbers = #tpu.dot_dimension_numbers<[1], [0], [0], [1], [0, 0, 1, 1], [], []>} : vector<8x128xbf16>, vector<128x128xbf16>, vector<8x128xf32> -> vector<8x128xf32>
    %c0_19 = arith.constant 0 : index
    %c896 = arith.constant 896 : index
    %27 = vector.load %arg6[%c0_19, %c896] : memref<1x1024xf32, #tpu.memory_space<vmem>>, vector<1x128xf32>
    %28 = vector.broadcast %27 : vector<1x128xf32> to vector<8x128xf32>
    %29 = arith.addf %26, %28 : vector<8x128xf32>
    %c0_20 = arith.constant 0 : index
    %c0_21 = arith.constant 0 : index
    %30 = vector.load %arg7[%c0_20, %c0_21] : memref<8x128xf32, #tpu.memory_space<vmem>>, vector<8x128xf32>
    tpu.vector_store %arg7[%c0_20, %c0_21], %29 {strides = array<i32>} : memref<8x128xf32, #tpu.memory_space<vmem>>, vector<8x128xf32>,
    return
  }
  func.func @transform_0(%arg0: i32) -> (i32, i32) {
    %c0_i32 = arith.constant 0 : i32
    %c0_i32_0 = arith.constant 0 : i32
    return %arg0, %c0_i32 : i32, i32
  }
  func.func @transform_1(%arg0: i32) -> (i32, i32) {
    %c0_i32 = arith.constant 0 : i32
    %c0_i32_0 = arith.constant 0 : i32
    %c0_i32_1 = arith.constant 0 : i32
    return %c0_i32, %c0_i32_0 : i32, i32
  }
  func.func @transform_2(%arg0: i32) -> (i32, i32) {
    %c0_i32 = arith.constant 0 : i32
    %c0_i32_0 = arith.constant 0 : i32
    %c0_i32_1 = arith.constant 0 : i32
    return %c0_i32, %c0_i32_0 : i32, i32
  }
  func.func @transform_3(%arg0: i32) -> (i32, i32) {
    %c0_i32 = arith.constant 0 : i32
    %c0_i32_0 = arith.constant 0 : i32
    %c0_i32_1 = arith.constant 0 : i32
    return %c0_i32, %c0_i32_0 : i32, i32
  }
  func.func @transform_4(%arg0: i32) -> (i32, i32) {
    %c0_i32 = arith.constant 0 : i32
    %c0_i32_0 = arith.constant 0 : i32
    %c0_i32_1 = arith.constant 0 : i32
    return %c0_i32, %c0_i32_0 : i32, i32
  }
  func.func @transform_5(%arg0: i32) -> (i32, i32) {
    %c0_i32 = arith.constant 0 : i32
    %c0_i32_0 = arith.constant 0 : i32
    %c0_i32_1 = arith.constant 0 : i32
    return %c0_i32, %c0_i32_0 : i32, i32
  }
  func.func @transform_6(%arg0: i32) -> (i32, i32) {
    %c0_i32 = arith.constant 0 : i32
    %c0_i32_0 = arith.constant 0 : i32
    return %arg0, %c0_i32 : i32, i32
  }
}

</mosaic_0001>

<llo_original>
// kernel: tpu_custom_call.1
$region0: #{tpu_custom_call.1}
  #allocation0 [shape = 'u32[]', space=smem, size = 0x4, offset = 0x4, fixed_abs, tag = 'smem constant byte address 0x4 - core index']
  #allocation1 [shape = 'u32[144,128]{1,0:T(1,128)}', space=vmem, size = 0x12000, scoped, tag = 'internal scratch']
  %s0 = inlined_call_operand.hbm [shape: bf16[8,1024], index: 0, kind: input, shape index: {}]
  %s1 = inlined_call_operand.hbm [shape: bf16[1024,512], index: 1, kind: input, shape index: {}]
  %s2 = inlined_call_operand.hbm [shape: bf16[512,256], index: 2, kind: input, shape index: {}]
  %s3 = inlined_call_operand.hbm [shape: bf16[256,128], index: 3, kind: input, shape index: {}]
  %s4 = inlined_call_operand.hbm [shape: bf16[128,128], index: 4, kind: input, shape index: {}]
  %s5 = inlined_call_operand.vmem [shape: f32[1,1024], index: 5, kind: input, shape index: {}]
  %s6 = inlined_call_operand.hbm [shape: f32[8,128], index: 6, kind: output, shape index: {}]
  %s7 = sld [smem:[#allocation0]]
  $region54: #{tpu_custom_call.1} parent=0
    _
  %s9 = ssub.s32 1, %s7
  %s10 = scalar_select 0, %s9, %s7
  $region1: #{tpu_custom_call.1} parent=0
    #allocation2 [shape = 'u8[16384]{0}', space=vmem, size = 0x4000, scoped, tag = 'input window, operand 0, single buffered']
    #allocation3 [shape = 's32[1]{0}', space=sflag, size = 0x4, scoped, tag = 'scoped memory for tpu_custom_call.1']
    #allocation4 [shape = 's32[1]{0}', space=sflag, size = 0x4, scoped, tag = 'scoped memory for tpu_custom_call.1']
    #allocation5 [shape = 'u8[1048576]{0}', space=vmem, size = 0x100000, scoped, tag = 'input window, operand 1, single buffered']
    #allocation6 [shape = 's32[1]{0}', space=sflag, size = 0x4, scoped, tag = 'scoped memory for tpu_custom_call.1']
    #allocation7 [shape = 'u8[262144]{0}', space=vmem, size = 0x40000, scoped, tag = 'input window, operand 2, single buffered']
    #allocation8 [shape = 'u8[65536]{0}', space=vmem, size = 0x10000, scoped, tag = 'input window, operand 3, single buffered']
    #allocation9 [shape = 's32[1]{0}', space=sflag, size = 0x4, scoped, tag = 'scoped memory for tpu_custom_call.1']
    #allocation10 [shape = 'u8[32768]{0}', space=vmem, size = 0x8000, scoped, tag = 'input window, operand 4, single buffered']
    #allocation11 [shape = 'u8[4096]{0}', space=vmem, size = 0x1000, scoped, tag = 'output window, operand 0, single buffered']
    %11 = vsyncpa [#allocation3], 0
    %12 = vsyncpa [#allocation6], 0
    %13 = vsyncpa [#allocation9], 0
    %14 = vsyncpa [#allocation4], 0
    // Predicated region
    $region2: #{tpu_custom_call.1} parent=1 // pred_check
      _
    $region3: #{tpu_custom_call.1} parent=1 // pred_check_branch
      %16 = sbr.rel (0) target = $region5
    $region4: #{tpu_custom_call.1} parent=1 // pred_region
      %s18 = ssub.s32 512, 512
      %19 = vsyncadd [#allocation3], %s18
      %s21 = sshll.u32 [#allocation2], 4
      %s22 = int_to_ptr.vmem [resolvable:$true] %s21
      %24 = dma.hbm_to_vmem [thread:$0]  %s0, 512, %s22, [#allocation3]
    $region5: #{tpu_custom_call.1} parent=1 // pred_fallthru
      _
    // Predicated region
    $region6: #{tpu_custom_call.1} parent=1 // pred_check
      _
    $region7: #{tpu_custom_call.1} parent=1 // pred_check_branch
      %26 = sbr.rel (0) target = $region9
    $region8: #{tpu_custom_call.1} parent=1 // pred_region
      %s28 = ssub.s32 32768, 32768
      %29 = vsyncadd [#allocation6], %s28
      %s30 = sshll.u32 [#allocation5], 4
      %s31 = int_to_ptr.vmem [resolvable:$true] %s30
      %36 = dma.hbm_to_vmem [thread:$0]  %s1, 32768, %s31, [#allocation6], 256, 256, 16
    $region9: #{tpu_custom_call.1} parent=1 // pred_fallthru
      _
    // Predicated region
    $region10: #{tpu_custom_call.1} parent=1 // pred_check
      _
    $region11: #{tpu_custom_call.1} parent=1 // pred_check_branch
      %38 = sbr.rel (0) target = $region13
    $region12: #{tpu_custom_call.1} parent=1 // pred_region
      %s40 = ssub.s32 8192, 8192
      %41 = vsyncadd [#allocation6], %s40
      %s42 = sshll.u32 [#allocation7], 4
      %s43 = int_to_ptr.vmem [resolvable:$true] %s42
      %48 = dma.hbm_to_vmem [thread:$0]  %s2, 8192, %s43, [#allocation6], 128, 128, 8
    $region13: #{tpu_custom_call.1} parent=1 // pred_fallthru
      _
    // Predicated region
    $region14: #{tpu_custom_call.1} parent=1 // pred_check
      _
    $region15: #{tpu_custom_call.1} parent=1 // pred_check_branch
      %50 = sbr.rel (0) target = $region17
    $region16: #{tpu_custom_call.1} parent=1 // pred_region
      %s52 = ssub.s32 2048, 2048
      %53 = vsyncadd [#allocation9], %s52
      %s54 = sshll.u32 [#allocation8], 4
      %s55 = int_to_ptr.vmem [resolvable:$true] %s54
      %60 = dma.hbm_to_vmem [thread:$0]  %s3, 2048, %s55, [#allocation9], 64, 64, 4
    $region17: #{tpu_custom_call.1} parent=1 // pred_fallthru
      _
    // Predicated region
    $region18: #{tpu_custom_call.1} parent=1 // pred_check
      _
    $region19: #{tpu_custom_call.1} parent=1 // pred_check_branch
      %62 = sbr.rel (0) target = $region21
    $region20: #{tpu_custom_call.1} parent=1 // pred_region
      %s64 = ssub.s32 1024, 1024
      %65 = vsyncadd [#allocation9], %s64
      %s66 = sshll.u32 [#allocation10], 4
      %s67 = int_to_ptr.vmem [resolvable:$true] %s66
      %72 = dma.hbm_to_vmem [thread:$0]  %s4, 1024, %s67, [#allocation9], 64, 64, 4
    $region21: #{tpu_custom_call.1} parent=1 // pred_fallthru
      _
    // Predicated region
    $region22: #{tpu_custom_call.1} parent=1 // pred_check
      _
    $region23: #{tpu_custom_call.1} parent=1 // pred_check_branch
      %74 = sbr.rel (0) target = $region25
    $region24: #{tpu_custom_call.1} parent=1 // pred_region
      _
    $region25: #{tpu_custom_call.1} parent=1 // pred_fallthru
      _
    // Predicated region
    $region26: #{tpu_custom_call.1} parent=1 // pred_check
      _
    $region27: #{tpu_custom_call.1} parent=1 // pred_check_branch
      %76 = sbr.rel (0) target = $region29
    $region28: #{tpu_custom_call.1} parent=1 // pred_region
      %77 = dma.done [#allocation3], 512
    $region29: #{tpu_custom_call.1} parent=1 // pred_fallthru
      _
    // Predicated region
    $region30: #{tpu_custom_call.1} parent=1 // pred_check
      _
    $region31: #{tpu_custom_call.1} parent=1 // pred_check_branch
      %79 = sbr.rel (0) target = $region33
    $region32: #{tpu_custom_call.1} parent=1 // pred_region
      %80 = dma.done [#allocation6], 32768
    $region33: #{tpu_custom_call.1} parent=1 // pred_fallthru
      _
    // Predicated region
    $region34: #{tpu_custom_call.1} parent=1 // pred_check
      _
    $region35: #{tpu_custom_call.1} parent=1 // pred_check_branch
      %82 = sbr.rel (0) target = $region37
    $region36: #{tpu_custom_call.1} parent=1 // pred_region
      %83 = dma.done [#allocation6], 8192
    $region37: #{tpu_custom_call.1} parent=1 // pred_fallthru
      _
    // Predicated region
    $region38: #{tpu_custom_call.1} parent=1 // pred_check
      _
    $region39: #{tpu_custom_call.1} parent=1 // pred_check_branch
      %85 = sbr.rel (0) target = $region41
    $region40: #{tpu_custom_call.1} parent=1 // pred_region
      %86 = dma.done [#allocation9], 2048
    $region41: #{tpu_custom_call.1} parent=1 // pred_fallthru
      _
    // Predicated region
    $region42: #{tpu_custom_call.1} parent=1 // pred_check
      _
    $region43: #{tpu_custom_call.1} parent=1 // pred_check_branch
      %88 = sbr.rel (0) target = $region45
    $region44: #{tpu_custom_call.1} parent=1 // pred_region
      %89 = dma.done [#allocation9], 1024
    $region45: #{tpu_custom_call.1} parent=1 // pred_fallthru
      _
    %v91 = vld [vmem:[#allocation2] sm:$0xff]
    %v92 = vld [vmem:[#allocation2 + $0x8] sm:$0xff]
    %v93 = vld [vmem:[#allocation2 + $0x10] sm:$0xff]
    %v94 = vld [vmem:[#allocation2 + $0x18] sm:$0xff]
    %v95 = vld [vmem:[#allocation5] sm:$0xff]
    %v96 = vld [vmem:[#allocation5 + $0x8] sm:$0xff]
    %v97 = vld [vmem:[#allocation5 + $0x10] sm:$0xff]
    %v98 = vld [vmem:[#allocation5 + $0x18] sm:$0xff]
    %v99 = vld [vmem:[#allocation5 + $0x20] sm:$0xff]
    %v100 = vld [vmem:[#allocation5 + $0x28] sm:$0xff]
    %v101 = vld [vmem:[#allocation5 + $0x30] sm:$0xff]
    %v102 = vld [vmem:[#allocation5 + $0x38] sm:$0xff]
    %v103 = vld [vmem:[#allocation5 + $0x40] sm:$0xff]
    %v104 = vld [vmem:[#allocation5 + $0x48] sm:$0xff]
    %v105 = vld [vmem:[#allocation5 + $0x50] sm:$0xff]
    %v106 = vld [vmem:[#allocation5 + $0x58] sm:$0xff]
    %v107 = vld [vmem:[#allocation5 + $0x60] sm:$0xff]
    %v108 = vld [vmem:[#allocation5 + $0x68] sm:$0xff]
    %v109 = vld [vmem:[#allocation5 + $0x70] sm:$0xff]
    %v110 = vld [vmem:[#allocation5 + $0x78] sm:$0xff]
    %v111 = vld [vmem:[#allocation5 + $0x80] sm:$0xff]
    %v112 = vld [vmem:[#allocation5 + $0x88] sm:$0xff]
    %v113 = vld [vmem:[#allocation5 + $0x90] sm:$0xff]
    %v114 = vld [vmem:[#allocation5 + $0x98] sm:$0xff]
    %v115 = vld [vmem:[#allocation5 + $0xa0] sm:$0xff]
    %v116 = vld [vmem:[#allocation5 + $0xa8] sm:$0xff]
    %v117 = vld [vmem:[#allocation5 + $0xb0] sm:$0xff]
    %v118 = vld [vmem:[#allocation5 + $0xb8] sm:$0xff]
    %v119 = vld [vmem:[#allocation5 + $0xc0] sm:$0xff]
    %v120 = vld [vmem:[#allocation5 + $0xc8] sm:$0xff]
    %v121 = vld [vmem:[#allocation5 + $0xd0] sm:$0xff]
    %v122 = vld [vmem:[#allocation5 + $0xd8] sm:$0xff]
    %v123 = vld [vmem:[#allocation5 + $0xe0] sm:$0xff]
    %v124 = vld [vmem:[#allocation5 + $0xe8] sm:$0xff]
    %v125 = vld [vmem:[#allocation5 + $0xf0] sm:$0xff]
    %v126 = vld [vmem:[#allocation5 + $0xf8] sm:$0xff]
    %v127 = vld [vmem:[#allocation5 + $0x100] sm:$0xff]
    %v128 = vld [vmem:[#allocation5 + $0x108] sm:$0xff]
    %v129 = vld [vmem:[#allocation5 + $0x110] sm:$0xff]
    %v130 = vld [vmem:[#allocation5 + $0x118] sm:$0xff]
    %v131 = vld [vmem:[#allocation5 + $0x120] sm:$0xff]
    %v132 = vld [vmem:[#allocation5 + $0x128] sm:$0xff]
    %v133 = vld [vmem:[#allocation5 + $0x130] sm:$0xff]
    %v134 = vld [vmem:[#allocation5 + $0x138] sm:$0xff]
    %v135 = vld [vmem:[#allocation5 + $0x140] sm:$0xff]
    %v136 = vld [vmem:[#allocation5 + $0x148] sm:$0xff]
    %v137 = vld [vmem:[#allocation5 + $0x150] sm:$0xff]
    %v138 = vld [vmem:[#allocation5 + $0x158] sm:$0xff]
    %v139 = vld [vmem:[#allocation5 + $0x160] sm:$0xff]
    %v140 = vld [vmem:[#allocation5 + $0x168] sm:$0xff]
    %v141 = vld [vmem:[#allocation5 + $0x170] sm:$0xff]
    %v142 = vld [vmem:[#allocation5 + $0x178] sm:$0xff]
    %v143 = vld [vmem:[#allocation5 + $0x180] sm:$0xff]
    %v144 = vld [vmem:[#allocation5 + $0x188] sm:$0xff]
    %v145 = vld [vmem:[#allocation5 + $0x190] sm:$0xff]
    %v146 = vld [vmem:[#allocation5 + $0x198] sm:$0xff]
    %v147 = vld [vmem:[#allocation5 + $0x1a0] sm:$0xff]
    %v148 = vld [vmem:[#allocation5 + $0x1a8] sm:$0xff]
    %v149 = vld [vmem:[#allocation5 + $0x1b0] sm:$0xff]
    %v150 = vld [vmem:[#allocation5 + $0x1b8] sm:$0xff]
    %v151 = vld [vmem:[#allocation5 + $0x1c0] sm:$0xff]
    %v152 = vld [vmem:[#allocation5 + $0x1c8] sm:$0xff]
    %v153 = vld [vmem:[#allocation5 + $0x1d0] sm:$0xff]
    %v154 = vld [vmem:[#allocation5 + $0x1d8] sm:$0xff]
    %v155 = vld [vmem:[#allocation5 + $0x1e0] sm:$0xff]
    %v156 = vld [vmem:[#allocation5 + $0x1e8] sm:$0xff]
    %v157 = vld [vmem:[#allocation5 + $0x1f0] sm:$0xff]
    %v158 = vld [vmem:[#allocation5 + $0x1f8] sm:$0xff]
    %v159 = vld [vmem:[#allocation5 + $0x200] sm:$0xff]
    %v160 = vld [vmem:[#allocation5 + $0x208] sm:$0xff]
    %v161 = vld [vmem:[#allocation5 + $0x210] sm:$0xff]
    %v162 = vld [vmem:[#allocation5 + $0x218] sm:$0xff]
    %v163 = vld [vmem:[#allocation5 + $0x220] sm:$0xff]
    %v164 = vld [vmem:[#allocation5 + $0x228] sm:$0xff]
    %v165 = vld [vmem:[#allocation5 + $0x230] sm:$0xff]
    %v166 = vld [vmem:[#allocation5 + $0x238] sm:$0xff]
    %v167 = vld [vmem:[#allocation5 + $0x240] sm:$0xff]
    %v168 = vld [vmem:[#allocation5 + $0x248] sm:$0xff]
    %v169 = vld [vmem:[#allocation5 + $0x250] sm:$0xff]
    %v170 = vld [vmem:[#allocation5 + $0x258] sm:$0xff]
    %v171 = vld [vmem:[#allocation5 + $0x260] sm:$0xff]
    %v172 = vld [vmem:[#allocation5 + $0x268] sm:$0xff]
    %v173 = vld [vmem:[#allocation5 + $0x270] sm:$0xff]
    %v174 = vld [vmem:[#allocation5 + $0x278] sm:$0xff]
    %v175 = vld [vmem:[#allocation5 + $0x280] sm:$0xff]
    %v176 = vld [vmem:[#allocation5 + $0x288] sm:$0xff]
    %v177 = vld [vmem:[#allocation5 + $0x290] sm:$0xff]
    %v178 = vld [vmem:[#allocation5 + $0x298] sm:$0xff]
    %v179 = vld [vmem:[#allocation5 + $0x2a0] sm:$0xff]
    %v180 = vld [vmem:[#allocation5 + $0x2a8] sm:$0xff]
    %v181 = vld [vmem:[#allocation5 + $0x2b0] sm:$0xff]
    %v182 = vld [vmem:[#allocation5 + $0x2b8] sm:$0xff]
    %v183 = vld [vmem:[#allocation5 + $0x2c0] sm:$0xff]
    %v184 = vld [vmem:[#allocation5 + $0x2c8] sm:$0xff]
    %v185 = vld [vmem:[#allocation5 + $0x2d0] sm:$0xff]
    %v186 = vld [vmem:[#allocation5 + $0x2d8] sm:$0xff]
    %v187 = vld [vmem:[#allocation5 + $0x2e0] sm:$0xff]
    %v188 = vld [vmem:[#allocation5 + $0x2e8] sm:$0xff]
    %v189 = vld [vmem:[#allocation5 + $0x2f0] sm:$0xff]
    %v190 = vld [vmem:[#allocation5 + $0x2f8] sm:$0xff]
    %v191 = vld [vmem:[#allocation5 + $0x300] sm:$0xff]
    %v192 = vld [vmem:[#allocation5 + $0x308] sm:$0xff]
    %v193 = vld [vmem:[#allocation5 + $0x310] sm:$0xff]
    %v194 = vld [vmem:[#allocation5 + $0x318] sm:$0xff]
    %v195 = vld [vmem:[#allocation5 + $0x320] sm:$0xff]
    %v196 = vld [vmem:[#allocation5 + $0x328] sm:$0xff]
    %v197 = vld [vmem:[#allocation5 + $0x330] sm:$0xff]
    %v198 = vld [vmem:[#allocation5 + $0x338] sm:$0xff]
    %v199 = vld [vmem:[#allocation5 + $0x340] sm:$0xff]
    %v200 = vld [vmem:[#allocation5 + $0x348] sm:$0xff]
    %v201 = vld [vmem:[#allocation5 + $0x350] sm:$0xff]
    %v202 = vld [vmem:[#allocation5 + $0x358] sm:$0xff]
    %v203 = vld [vmem:[#allocation5 + $0x360] sm:$0xff]
    %v204 = vld [vmem:[#allocation5 + $0x368] sm:$0xff]
    %v205 = vld [vmem:[#allocation5 + $0x370] sm:$0xff]
    %v206 = vld [vmem:[#allocation5 + $0x378] sm:$0xff]
    %v207 = vld [vmem:[#allocation5 + $0x380] sm:$0xff]
    %v208 = vld [vmem:[#allocation5 + $0x388] sm:$0xff]
    %v209 = vld [vmem:[#allocation5 + $0x390] sm:$0xff]
    %v210 = vld [vmem:[#allocation5 + $0x398] sm:$0xff]
    %v211 = vld [vmem:[#allocation5 + $0x3a0] sm:$0xff]
    %v212 = vld [vmem:[#allocation5 + $0x3a8] sm:$0xff]
    %v213 = vld [vmem:[#allocation5 + $0x3b0] sm:$0xff]
    %v214 = vld [vmem:[#allocation5 + $0x3b8] sm:$0xff]
    %v215 = vld [vmem:[#allocation5 + $0x3c0] sm:$0xff]
    %v216 = vld [vmem:[#allocation5 + $0x3c8] sm:$0xff]
    %v217 = vld [vmem:[#allocation5 + $0x3d0] sm:$0xff]
    %v218 = vld [vmem:[#allocation5 + $0x3d8] sm:$0xff]
    %v219 = vld [vmem:[#allocation5 + $0x3e0] sm:$0xff]
    %v220 = vld [vmem:[#allocation5 + $0x3e8] sm:$0xff]
    %v221 = vld [vmem:[#allocation5 + $0x3f0] sm:$0xff]
    %v222 = vld [vmem:[#allocation5 + $0x3f8] sm:$0xff]
    %v223 = vld [vmem:[#allocation5 + $0x400] sm:$0xff]
    %v224 = vld [vmem:[#allocation5 + $0x408] sm:$0xff]
    %v225 = vld [vmem:[#allocation5 + $0x410] sm:$0xff]
    %v226 = vld [vmem:[#allocation5 + $0x418] sm:$0xff]
    %v227 = vld [vmem:[#allocation5 + $0x420] sm:$0xff]
    %v228 = vld [vmem:[#allocation5 + $0x428] sm:$0xff]
    %v229 = vld [vmem:[#allocation5 + $0x430] sm:$0xff]
    %v230 = vld [vmem:[#allocation5 + $0x438] sm:$0xff]
    %v231 = vld [vmem:[#allocation5 + $0x440] sm:$0xff]
    %v232 = vld [vmem:[#allocation5 + $0x448] sm:$0xff]
    %v233 = vld [vmem:[#allocation5 + $0x450] sm:$0xff]
    %v234 = vld [vmem:[#allocation5 + $0x458] sm:$0xff]
    %v235 = vld [vmem:[#allocation5 + $0x460] sm:$0xff]
    %v236 = vld [vmem:[#allocation5 + $0x468] sm:$0xff]
    %v237 = vld [vmem:[#allocation5 + $0x470] sm:$0xff]
    %v238 = vld [vmem:[#allocation5 + $0x478] sm:$0xff]
    %v239 = vld [vmem:[#allocation5 + $0x480] sm:$0xff]
    %v240 = vld [vmem:[#allocation5 + $0x488] sm:$0xff]
    %v241 = vld [vmem:[#allocation5 + $0x490] sm:$0xff]
    %v242 = vld [vmem:[#allocation5 + $0x498] sm:$0xff]
    %v243 = vld [vmem:[#allocation5 + $0x4a0] sm:$0xff]
    %v244 = vld [vmem:[#allocation5 + $0x4a8] sm:$0xff]
    %v245 = vld [vmem:[#allocation5 + $0x4b0] sm:$0xff]
    %v246 = vld [vmem:[#allocation5 + $0x4b8] sm:$0xff]
    %v247 = vld [vmem:[#allocation5 + $0x4c0] sm:$0xff]
    %v248 = vld [vmem:[#allocation5 + $0x4c8] sm:$0xff]
    %v249 = vld [vmem:[#allocation5 + $0x4d0] sm:$0xff]
    %v250 = vld [vmem:[#allocation5 + $0x4d8] sm:$0xff]
    %v251 = vld [vmem:[#allocation5 + $0x4e0] sm:$0xff]
    %v252 = vld [vmem:[#allocation5 + $0x4e8] sm:$0xff]
    %v253 = vld [vmem:[#allocation5 + $0x4f0] sm:$0xff]
    %v254 = vld [vmem:[#allocation5 + $0x4f8] sm:$0xff]
    %v255 = vld [vmem:[#allocation5 + $0x500] sm:$0xff]
    %v256 = vld [vmem:[#allocation5 + $0x508] sm:$0xff]
    %v257 = vld [vmem:[#allocation5 + $0x510] sm:$0xff]
    %v258 = vld [vmem:[#allocation5 + $0x518] sm:$0xff]
    %v259 = vld [vmem:[#allocation5 + $0x520] sm:$0xff]
    %v260 = vld [vmem:[#allocation5 + $0x528] sm:$0xff]
    %v261 = vld [vmem:[#allocation5 + $0x530] sm:$0xff]
    %v262 = vld [vmem:[#allocation5 + $0x538] sm:$0xff]
    %v263 = vld [vmem:[#allocation5 + $0x540] sm:$0xff]
    %v264 = vld [vmem:[#allocation5 + $0x548] sm:$0xff]
    %v265 = vld [vmem:[#allocation5 + $0x550] sm:$0xff]
    %v266 = vld [vmem:[#allocation5 + $0x558] sm:$0xff]
    %v267 = vld [vmem:[#allocation5 + $0x560] sm:$0xff]
    %v268 = vld [vmem:[#allocation5 + $0x568] sm:$0xff]
    %v269 = vld [vmem:[#allocation5 + $0x570] sm:$0xff]
    %v270 = vld [vmem:[#allocation5 + $0x578] sm:$0xff]
    %v271 = vld [vmem:[#allocation5 + $0x580] sm:$0xff]
    %v272 = vld [vmem:[#allocation5 + $0x588] sm:$0xff]
    %v273 = vld [vmem:[#allocation5 + $0x590] sm:$0xff]
    %v274 = vld [vmem:[#allocation5 + $0x598] sm:$0xff]
    %v275 = vld [vmem:[#allocation5 + $0x5a0] sm:$0xff]
    %v276 = vld [vmem:[#allocation5 + $0x5a8] sm:$0xff]
    %v277 = vld [vmem:[#allocation5 + $0x5b0] sm:$0xff]
    %v278 = vld [vmem:[#allocation5 + $0x5b8] sm:$0xff]
    %v279 = vld [vmem:[#allocation5 + $0x5c0] sm:$0xff]
    %v280 = vld [vmem:[#allocation5 + $0x5c8] sm:$0xff]
    %v281 = vld [vmem:[#allocation5 + $0x5d0] sm:$0xff]
    %v282 = vld [vmem:[#allocation5 + $0x5d8] sm:$0xff]
    %v283 = vld [vmem:[#allocation5 + $0x5e0] sm:$0xff]
    %v284 = vld [vmem:[#allocation5 + $0x5e8] sm:$0xff]
    %v285 = vld [vmem:[#allocation5 + $0x5f0] sm:$0xff]
    %v286 = vld [vmem:[#allocation5 + $0x5f8] sm:$0xff]
    %v287 = vld [vmem:[#allocation5 + $0x600] sm:$0xff]
    %v288 = vld [vmem:[#allocation5 + $0x608] sm:$0xff]
    %v289 = vld [vmem:[#allocation5 + $0x610] sm:$0xff]
    %v290 = vld [vmem:[#allocation5 + $0x618] sm:$0xff]
    %v291 = vld [vmem:[#allocation5 + $0x620] sm:$0xff]
    %v292 = vld [vmem:[#allocation5 + $0x628] sm:$0xff]
    %v293 = vld [vmem:[#allocation5 + $0x630] sm:$0xff]
    %v294 = vld [vmem:[#allocation5 + $0x638] sm:$0xff]
    %v295 = vld [vmem:[#allocation5 + $0x640] sm:$0xff]
    %v296 = vld [vmem:[#allocation5 + $0x648] sm:$0xff]
    %v297 = vld [vmem:[#allocation5 + $0x650] sm:$0xff]
    %v298 = vld [vmem:[#allocation5 + $0x658] sm:$0xff]
    %v299 = vld [vmem:[#allocation5 + $0x660] sm:$0xff]
    %v300 = vld [vmem:[#allocation5 + $0x668] sm:$0xff]
    %v301 = vld [vmem:[#allocation5 + $0x670] sm:$0xff]
    %v302 = vld [vmem:[#allocation5 + $0x678] sm:$0xff]
    %v303 = vld [vmem:[#allocation5 + $0x680] sm:$0xff]
    %v304 = vld [vmem:[#allocation5 + $0x688] sm:$0xff]
    %v305 = vld [vmem:[#allocation5 + $0x690] sm:$0xff]
    %v306 = vld [vmem:[#allocation5 + $0x698] sm:$0xff]
    %v307 = vld [vmem:[#allocation5 + $0x6a0] sm:$0xff]
    %v308 = vld [vmem:[#allocation5 + $0x6a8] sm:$0xff]
    %v309 = vld [vmem:[#allocation5 + $0x6b0] sm:$0xff]
    %v310 = vld [vmem:[#allocation5 + $0x6b8] sm:$0xff]
    %v311 = vld [vmem:[#allocation5 + $0x6c0] sm:$0xff]
    %v312 = vld [vmem:[#allocation5 + $0x6c8] sm:$0xff]
    %v313 = vld [vmem:[#allocation5 + $0x6d0] sm:$0xff]
    %v314 = vld [vmem:[#allocation5 + $0x6d8] sm:$0xff]
    %v315 = vld [vmem:[#allocation5 + $0x6e0] sm:$0xff]
    %v316 = vld [vmem:[#allocation5 + $0x6e8] sm:$0xff]
    %v317 = vld [vmem:[#allocation5 + $0x6f0] sm:$0xff]
    %v318 = vld [vmem:[#allocation5 + $0x6f8] sm:$0xff]
    %v319 = vld [vmem:[#allocation5 + $0x700] sm:$0xff]
    %v320 = vld [vmem:[#allocation5 + $0x708] sm:$0xff]
    %v321 = vld [vmem:[#allocation5 + $0x710] sm:$0xff]
    %v322 = vld [vmem:[#allocation5 + $0x718] sm:$0xff]
    %v323 = vld [vmem:[#allocation5 + $0x720] sm:$0xff]
    %v324 = vld [vmem:[#allocation5 + $0x728] sm:$0xff]
    %v325 = vld [vmem:[#allocation5 + $0x730] sm:$0xff]
    %v326 = vld [vmem:[#allocation5 + $0x738] sm:$0xff]
    %v327 = vld [vmem:[#allocation5 + $0x740] sm:$0xff]
    %v328 = vld [vmem:[#allocation5 + $0x748] sm:$0xff]
    %v329 = vld [vmem:[#allocation5 + $0x750] sm:$0xff]
    %v330 = vld [vmem:[#allocation5 + $0x758] sm:$0xff]
    %v331 = vld [vmem:[#allocation5 + $0x760] sm:$0xff]
    %v332 = vld [vmem:[#allocation5 + $0x768] sm:$0xff]
    %v333 = vld [vmem:[#allocation5 + $0x770] sm:$0xff]
    %v334 = vld [vmem:[#allocation5 + $0x778] sm:$0xff]
    %v335 = vld [vmem:[#allocation5 + $0x780] sm:$0xff]
    %v336 = vld [vmem:[#allocation5 + $0x788] sm:$0xff]
    %v337 = vld [vmem:[#allocation5 + $0x790] sm:$0xff]
    %v338 = vld [vmem:[#allocation5 + $0x798] sm:$0xff]
    %v339 = vld [vmem:[#allocation5 + $0x7a0] sm:$0xff]
    %v340 = vld [vmem:[#allocation5 + $0x7a8] sm:$0xff]
    %v341 = vld [vmem:[#allocation5 + $0x7b0] sm:$0xff]
    %v342 = vld [vmem:[#allocation5 + $0x7b8] sm:$0xff]
    %v343 = vld [vmem:[#allocation5 + $0x7c0] sm:$0xff]
    %v344 = vld [vmem:[#allocation5 + $0x7c8] sm:$0xff]
    %v345 = vld [vmem:[#allocation5 + $0x7d0] sm:$0xff]
    %v346 = vld [vmem:[#allocation5 + $0x7d8] sm:$0xff]
    %v347 = vld [vmem:[#allocation5 + $0x7e0] sm:$0xff]
    %v348 = vld [vmem:[#allocation5 + $0x7e8] sm:$0xff]
    %v349 = vld [vmem:[#allocation5 + $0x7f0] sm:$0xff]
    %v350 = vld [vmem:[#allocation5 + $0x7f8] sm:$0xff]
    %v351 = vld [vmem:[%s5] sm:$0xf]
    %v353 = vlaneseq
    %v354 = vshrl.u32 %v353, 7
    %v355 = vsub.s32 0, %v354
    %v356 = vrot.slane %v351, %v355
    %v357 = vlaneseq
    %v358 = vshrl.u32 %v357, 7
    %v359 = vsub.s32 1, %v358
    %v360 = vrot.slane %v351, %v359
    %v361 = vlaneseq
    %v362 = vshrl.u32 %v361, 7
    %v363 = vsub.s32 2, %v362
    %v364 = vrot.slane %v351, %v363
    %v365 = vlaneseq
    %v366 = vshrl.u32 %v365, 7
    %v367 = vsub.s32 3, %v366
    %v368 = vrot.slane %v351, %v367
    %v377 = vunpack.c.l.b16 %v91
    %v378 = vunpack.c.h.b16 %v91
    %v379 = vunpack.c.l.b16 %v92
    %v380 = vunpack.c.h.b16 %v92
    %v381 = vunpack.c.l.b16 %v93
    %v382 = vunpack.c.h.b16 %v93
    %v383 = vunpack.c.l.b16 %v94
    %v384 = vunpack.c.h.b16 %v94
    %v385 = vpack.c.b16 %v377, %v377
    %v386 = vpack.c.b16 %v378, %v378
    %v387 = vpack.c.b16 %v379, %v379
    %v388 = vpack.c.b16 %v380, %v380
    %v389 = vpack.c.b16 %v381, %v381
    %v390 = vpack.c.b16 %v382, %v382
    %v391 = vpack.c.b16 %v383, %v383
    %v392 = vpack.c.b16 %v384, %v384
    %v657 = vunpack.c.l.b16 %v95
    %v658 = vunpack.c.h.b16 %v95
    %v659 = vunpack.c.l.b16 %v96
    %v660 = vunpack.c.h.b16 %v96
    %v661 = vunpack.c.l.b16 %v97
    %v662 = vunpack.c.h.b16 %v97
    %v663 = vunpack.c.l.b16 %v98
    %v664 = vunpack.c.h.b16 %v98
    %v665 = vunpack.c.l.b16 %v99
    %v666 = vunpack.c.h.b16 %v99
    %v667 = vunpack.c.l.b16 %v100
    %v668 = vunpack.c.h.b16 %v100
    %v669 = vunpack.c.l.b16 %v101
    %v670 = vunpack.c.h.b16 %v101
    %v671 = vunpack.c.l.b16 %v102
    %v672 = vunpack.c.h.b16 %v102
    %v673 = vunpack.c.l.b16 %v103
    %v674 = vunpack.c.h.b16 %v103
    %v675 = vunpack.c.l.b16 %v104
    %v676 = vunpack.c.h.b16 %v104
    %v677 = vunpack.c.l.b16 %v105
    %v678 = vunpack.c.h.b16 %v105
    %v679 = vunpack.c.l.b16 %v106
    %v680 = vunpack.c.h.b16 %v106
    %v681 = vunpack.c.l.b16 %v107
    %v682 = vunpack.c.h.b16 %v107
    %v683 = vunpack.c.l.b16 %v108
    %v684 = vunpack.c.h.b16 %v108
    %v685 = vunpack.c.l.b16 %v109
    %v686 = vunpack.c.h.b16 %v109
    %v687 = vunpack.c.l.b16 %v110
    %v688 = vunpack.c.h.b16 %v110
    %v689 = vunpack.c.l.b16 %v111
    %v690 = vunpack.c.h.b16 %v111
    %v691 = vunpack.c.l.b16 %v112
    %v692 = vunpack.c.h.b16 %v112
    %v693 = vunpack.c.l.b16 %v113
    %v694 = vunpack.c.h.b16 %v113
    %v695 = vunpack.c.l.b16 %v114
    %v696 = vunpack.c.h.b16 %v114
    %v697 = vunpack.c.l.b16 %v115
    %v698 = vunpack.c.h.b16 %v115
    %v699 = vunpack.c.l.b16 %v116
    %v700 = vunpack.c.h.b16 %v116
    %v701 = vunpack.c.l.b16 %v117
    %v702 = vunpack.c.h.b16 %v117
    %v703 = vunpack.c.l.b16 %v118
    %v704 = vunpack.c.h.b16 %v118
    %v705 = vunpack.c.l.b16 %v119
    %v706 = vunpack.c.h.b16 %v119
    %v707 = vunpack.c.l.b16 %v120
    %v708 = vunpack.c.h.b16 %v120
    %v709 = vunpack.c.l.b16 %v121
    %v710 = vunpack.c.h.b16 %v121
    %v711 = vunpack.c.l.b16 %v122
    %v712 = vunpack.c.h.b16 %v122
    %v713 = vunpack.c.l.b16 %v123
    %v714 = vunpack.c.h.b16 %v123
    %v715 = vunpack.c.l.b16 %v124
    %v716 = vunpack.c.h.b16 %v124
    %v717 = vunpack.c.l.b16 %v125
    %v718 = vunpack.c.h.b16 %v125
    %v719 = vunpack.c.l.b16 %v126
    %v720 = vunpack.c.h.b16 %v126
    %v721 = vunpack.c.l.b16 %v127
    %v722 = vunpack.c.h.b16 %v127
    %v723 = vunpack.c.l.b16 %v128
    %v724 = vunpack.c.h.b16 %v128
    %v725 = vunpack.c.l.b16 %v129
    %v726 = vunpack.c.h.b16 %v129
    %v727 = vunpack.c.l.b16 %v130
    %v728 = vunpack.c.h.b16 %v130
    %v729 = vunpack.c.l.b16 %v131
    %v730 = vunpack.c.h.b16 %v131
    %v731 = vunpack.c.l.b16 %v132
    %v732 = vunpack.c.h.b16 %v132
    %v733 = vunpack.c.l.b16 %v133
    %v734 = vunpack.c.h.b16 %v133
    %v735 = vunpack.c.l.b16 %v134
    %v736 = vunpack.c.h.b16 %v134
    %v737 = vunpack.c.l.b16 %v135
    %v738 = vunpack.c.h.b16 %v135
    %v739 = vunpack.c.l.b16 %v136
    %v740 = vunpack.c.h.b16 %v136
    %v741 = vunpack.c.l.b16 %v137
    %v742 = vunpack.c.h.b16 %v137
    %v743 = vunpack.c.l.b16 %v138
    %v744 = vunpack.c.h.b16 %v138
    %v745 = vunpack.c.l.b16 %v139
    %v746 = vunpack.c.h.b16 %v139
    %v747 = vunpack.c.l.b16 %v140
    %v748 = vunpack.c.h.b16 %v140
    %v749 = vunpack.c.l.b16 %v141
    %v750 = vunpack.c.h.b16 %v141
    %v751 = vunpack.c.l.b16 %v142
    %v752 = vunpack.c.h.b16 %v142
    %v753 = vunpack.c.l.b16 %v143
    %v754 = vunpack.c.h.b16 %v143
    %v755 = vunpack.c.l.b16 %v144
    %v756 = vunpack.c.h.b16 %v144
    %v757 = vunpack.c.l.b16 %v145
    %v758 = vunpack.c.h.b16 %v145
    %v759 = vunpack.c.l.b16 %v146
    %v760 = vunpack.c.h.b16 %v146
    %v761 = vunpack.c.l.b16 %v147
    %v762 = vunpack.c.h.b16 %v147
    %v763 = vunpack.c.l.b16 %v148
    %v764 = vunpack.c.h.b16 %v148
    %v765 = vunpack.c.l.b16 %v149
    %v766 = vunpack.c.h.b16 %v149
    %v767 = vunpack.c.l.b16 %v150
    %v768 = vunpack.c.h.b16 %v150
    %v769 = vunpack.c.l.b16 %v151
    %v770 = vunpack.c.h.b16 %v151
    %v771 = vunpack.c.l.b16 %v152
    %v772 = vunpack.c.h.b16 %v152
    %v773 = vunpack.c.l.b16 %v153
    %v774 = vunpack.c.h.b16 %v153
    %v775 = vunpack.c.l.b16 %v154
    %v776 = vunpack.c.h.b16 %v154
    %v777 = vunpack.c.l.b16 %v155
    %v778 = vunpack.c.h.b16 %v155
    %v779 = vunpack.c.l.b16 %v156
    %v780 = vunpack.c.h.b16 %v156
    %v781 = vunpack.c.l.b16 %v157
    %v782 = vunpack.c.h.b16 %v157
    %v783 = vunpack.c.l.b16 %v158
    %v784 = vunpack.c.h.b16 %v158
    %v785 = vunpack.c.l.b16 %v159
    %v786 = vunpack.c.h.b16 %v159
    %v787 = vunpack.c.l.b16 %v160
    %v788 = vunpack.c.h.b16 %v160
    %v789 = vunpack.c.l.b16 %v161
    %v790 = vunpack.c.h.b16 %v161
    %v791 = vunpack.c.l.b16 %v162
    %v792 = vunpack.c.h.b16 %v162
    %v793 = vunpack.c.l.b16 %v163
    %v794 = vunpack.c.h.b16 %v163
    %v795 = vunpack.c.l.b16 %v164
    %v796 = vunpack.c.h.b16 %v164
    %v797 = vunpack.c.l.b16 %v165
    %v798 = vunpack.c.h.b16 %v165
    %v799 = vunpack.c.l.b16 %v166
    %v800 = vunpack.c.h.b16 %v166
    %v801 = vunpack.c.l.b16 %v167
    %v802 = vunpack.c.h.b16 %v167
    %v803 = vunpack.c.l.b16 %v168
    %v804 = vunpack.c.h.b16 %v168
    %v805 = vunpack.c.l.b16 %v169
    %v806 = vunpack.c.h.b16 %v169
    %v807 = vunpack.c.l.b16 %v170
    %v808 = vunpack.c.h.b16 %v170
    %v809 = vunpack.c.l.b16 %v171
    %v810 = vunpack.c.h.b16 %v171
    %v811 = vunpack.c.l.b16 %v172
    %v812 = vunpack.c.h.b16 %v172
    %v813 = vunpack.c.l.b16 %v173
    %v814 = vunpack.c.h.b16 %v173
    %v815 = vunpack.c.l.b16 %v174
    %v816 = vunpack.c.h.b16 %v174
    %v817 = vunpack.c.l.b16 %v175
    %v818 = vunpack.c.h.b16 %v175
    %v819 = vunpack.c.l.b16 %v176
    %v820 = vunpack.c.h.b16 %v176
    %v821 = vunpack.c.l.b16 %v177
    %v822 = vunpack.c.h.b16 %v177
    %v823 = vunpack.c.l.b16 %v178
    %v824 = vunpack.c.h.b16 %v178
    %v825 = vunpack.c.l.b16 %v179
    %v826 = vunpack.c.h.b16 %v179
    %v827 = vunpack.c.l.b16 %v180
    %v828 = vunpack.c.h.b16 %v180
    %v829 = vunpack.c.l.b16 %v181
    %v830 = vunpack.c.h.b16 %v181
    %v831 = vunpack.c.l.b16 %v182
    %v832 = vunpack.c.h.b16 %v182
    %v833 = vunpack.c.l.b16 %v183
    %v834 = vunpack.c.h.b16 %v183
    %v835 = vunpack.c.l.b16 %v184
    %v836 = vunpack.c.h.b16 %v184
    %v837 = vunpack.c.l.b16 %v185
    %v838 = vunpack.c.h.b16 %v185
    %v839 = vunpack.c.l.b16 %v186
    %v840 = vunpack.c.h.b16 %v186
    %v841 = vunpack.c.l.b16 %v187
    %v842 = vunpack.c.h.b16 %v187
    %v843 = vunpack.c.l.b16 %v188
    %v844 = vunpack.c.h.b16 %v188
    %v845 = vunpack.c.l.b16 %v189
    %v846 = vunpack.c.h.b16 %v189
    %v847 = vunpack.c.l.b16 %v190
    %v848 = vunpack.c.h.b16 %v190
    %v849 = vunpack.c.l.b16 %v191
    %v850 = vunpack.c.h.b16 %v191
    %v851 = vunpack.c.l.b16 %v192
    %v852 = vunpack.c.h.b16 %v192
    %v853 = vunpack.c.l.b16 %v193
    %v854 = vunpack.c.h.b16 %v193
    %v855 = vunpack.c.l.b16 %v194
    %v856 = vunpack.c.h.b16 %v194
    %v857 = vunpack.c.l.b16 %v195
    %v858 = vunpack.c.h.b16 %v195
    %v859 = vunpack.c.l.b16 %v196
    %v860 = vunpack.c.h.b16 %v196
    %v861 = vunpack.c.l.b16 %v197
    %v862 = vunpack.c.h.b16 %v197
    %v863 = vunpack.c.l.b16 %v198
    %v864 = vunpack.c.h.b16 %v198
    %v865 = vunpack.c.l.b16 %v199
    %v866 = vunpack.c.h.b16 %v199
    %v867 = vunpack.c.l.b16 %v200
    %v868 = vunpack.c.h.b16 %v200
    %v869 = vunpack.c.l.b16 %v201
    %v870 = vunpack.c.h.b16 %v201
    %v871 = vunpack.c.l.b16 %v202
    %v872 = vunpack.c.h.b16 %v202
    %v873 = vunpack.c.l.b16 %v203
    %v874 = vunpack.c.h.b16 %v203
    %v875 = vunpack.c.l.b16 %v204
    %v876 = vunpack.c.h.b16 %v204
    %v877 = vunpack.c.l.b16 %v205
    %v878 = vunpack.c.h.b16 %v205
    %v879 = vunpack.c.l.b16 %v206
    %v880 = vunpack.c.h.b16 %v206
    %v881 = vunpack.c.l.b16 %v207
    %v882 = vunpack.c.h.b16 %v207
    %v883 = vunpack.c.l.b16 %v208
    %v884 = vunpack.c.h.b16 %v208
    %v885 = vunpack.c.l.b16 %v209
    %v886 = vunpack.c.h.b16 %v209
    %v887 = vunpack.c.l.b16 %v210
    %v888 = vunpack.c.h.b16 %v210
    %v889 = vunpack.c.l.b16 %v211
    %v890 = vunpack.c.h.b16 %v211
    %v891 = vunpack.c.l.b16 %v212
    %v892 = vunpack.c.h.b16 %v212
    %v893 = vunpack.c.l.b16 %v213
    %v894 = vunpack.c.h.b16 %v213
    %v895 = vunpack.c.l.b16 %v214
    %v896 = vunpack.c.h.b16 %v214
    %v897 = vunpack.c.l.b16 %v215
    %v898 = vunpack.c.h.b16 %v215
    %v899 = vunpack.c.l.b16 %v216
    %v900 = vunpack.c.h.b16 %v216
    %v901 = vunpack.c.l.b16 %v217
    %v902 = vunpack.c.h.b16 %v217
    %v903 = vunpack.c.l.b16 %v218
    %v904 = vunpack.c.h.b16 %v218
    %v905 = vunpack.c.l.b16 %v219
    %v906 = vunpack.c.h.b16 %v219
    %v907 = vunpack.c.l.b16 %v220
    %v908 = vunpack.c.h.b16 %v220
    %v909 = vunpack.c.l.b16 %v221
    %v910 = vunpack.c.h.b16 %v221
    %v911 = vunpack.c.l.b16 %v222
    %v912 = vunpack.c.h.b16 %v222
    %v913 = vunpack.c.l.b16 %v223
    %v914 = vunpack.c.h.b16 %v223
    %v915 = vunpack.c.l.b16 %v224
    %v916 = vunpack.c.h.b16 %v224
    %v917 = vunpack.c.l.b16 %v225
    %v918 = vunpack.c.h.b16 %v225
    %v919 = vunpack.c.l.b16 %v226
    %v920 = vunpack.c.h.b16 %v226
    %v921 = vunpack.c.l.b16 %v227
    %v922 = vunpack.c.h.b16 %v227
    %v923 = vunpack.c.l.b16 %v228
    %v924 = vunpack.c.h.b16 %v228
    %v925 = vunpack.c.l.b16 %v229
    %v926 = vunpack.c.h.b16 %v229
    %v927 = vunpack.c.l.b16 %v230
    %v928 = vunpack.c.h.b16 %v230
    %v929 = vunpack.c.l.b16 %v231
    %v930 = vunpack.c.h.b16 %v231
    %v931 = vunpack.c.l.b16 %v232
    %v932 = vunpack.c.h.b16 %v232
    %v933 = vunpack.c.l.b16 %v233
    %v934 = vunpack.c.h.b16 %v233
    %v935 = vunpack.c.l.b16 %v234
    %v936 = vunpack.c.h.b16 %v234
    %v937 = vunpack.c.l.b16 %v235
    %v938 = vunpack.c.h.b16 %v235
    %v939 = vunpack.c.l.b16 %v236
    %v940 = vunpack.c.h.b16 %v236
    %v941 = vunpack.c.l.b16 %v237
    %v942 = vunpack.c.h.b16 %v237
    %v943 = vunpack.c.l.b16 %v238
    %v944 = vunpack.c.h.b16 %v238
    %v945 = vunpack.c.l.b16 %v239
    %v946 = vunpack.c.h.b16 %v239
    %v947 = vunpack.c.l.b16 %v240
    %v948 = vunpack.c.h.b16 %v240
    %v949 = vunpack.c.l.b16 %v241
    %v950 = vunpack.c.h.b16 %v241
    %v951 = vunpack.c.l.b16 %v242
    %v952 = vunpack.c.h.b16 %v242
    %v953 = vunpack.c.l.b16 %v243
    %v954 = vunpack.c.h.b16 %v243
    %v955 = vunpack.c.l.b16 %v244
    %v956 = vunpack.c.h.b16 %v244
    %v957 = vunpack.c.l.b16 %v245
    %v958 = vunpack.c.h.b16 %v245
    %v959 = vunpack.c.l.b16 %v246
    %v960 = vunpack.c.h.b16 %v246
    %v961 = vunpack.c.l.b16 %v247
    %v962 = vunpack.c.h.b16 %v247
    %v963 = vunpack.c.l.b16 %v248
    %v964 = vunpack.c.h.b16 %v248
    %v965 = vunpack.c.l.b16 %v249
    %v966 = vunpack.c.h.b16 %v249
    %v967 = vunpack.c.l.b16 %v250
    %v968 = vunpack.c.h.b16 %v250
    %v969 = vunpack.c.l.b16 %v251
    %v970 = vunpack.c.h.b16 %v251
    %v971 = vunpack.c.l.b16 %v252
    %v972 = vunpack.c.h.b16 %v252
    %v973 = vunpack.c.l.b16 %v253
    %v974 = vunpack.c.h.b16 %v253
    %v975 = vunpack.c.l.b16 %v254
    %v976 = vunpack.c.h.b16 %v254
    %v977 = vunpack.c.l.b16 %v255
    %v978 = vunpack.c.h.b16 %v255
    %v979 = vunpack.c.l.b16 %v256
    %v980 = vunpack.c.h.b16 %v256
    %v981 = vunpack.c.l.b16 %v257
    %v982 = vunpack.c.h.b16 %v257
    %v983 = vunpack.c.l.b16 %v258
    %v984 = vunpack.c.h.b16 %v258
    %v985 = vunpack.c.l.b16 %v259
    %v986 = vunpack.c.h.b16 %v259
    %v987 = vunpack.c.l.b16 %v260
    %v988 = vunpack.c.h.b16 %v260
    %v989 = vunpack.c.l.b16 %v261
    %v990 = vunpack.c.h.b16 %v261
    %v991 = vunpack.c.l.b16 %v262
    %v992 = vunpack.c.h.b16 %v262
    %v993 = vunpack.c.l.b16 %v263
    %v994 = vunpack.c.h.b16 %v263
    %v995 = vunpack.c.l.b16 %v264
    %v996 = vunpack.c.h.b16 %v264
    %v997 = vunpack.c.l.b16 %v265
    %v998 = vunpack.c.h.b16 %v265
    %v999 = vunpack.c.l.b16 %v266
    %v1000 = vunpack.c.h.b16 %v266
    %v1001 = vunpack.c.l.b16 %v267
    %v1002 = vunpack.c.h.b16 %v267
    %v1003 = vunpack.c.l.b16 %v268
    %v1004 = vunpack.c.h.b16 %v268
    %v1005 = vunpack.c.l.b16 %v269
    %v1006 = vunpack.c.h.b16 %v269
    %v1007 = vunpack.c.l.b16 %v270
    %v1008 = vunpack.c.h.b16 %v270
    %v1009 = vunpack.c.l.b16 %v271
    %v1010 = vunpack.c.h.b16 %v271
    %v1011 = vunpack.c.l.b16 %v272
    %v1012 = vunpack.c.h.b16 %v272
    %v1013 = vunpack.c.l.b16 %v273
    %v1014 = vunpack.c.h.b16 %v273
    %v1015 = vunpack.c.l.b16 %v274
    %v1016 = vunpack.c.h.b16 %v274
    %v1017 = vunpack.c.l.b16 %v275
    %v1018 = vunpack.c.h.b16 %v275
    %v1019 = vunpack.c.l.b16 %v276
    %v1020 = vunpack.c.h.b16 %v276
    %v1021 = vunpack.c.l.b16 %v277
    %v1022 = vunpack.c.h.b16 %v277
    %v1023 = vunpack.c.l.b16 %v278
    %v1024 = vunpack.c.h.b16 %v278
    %v1025 = vunpack.c.l.b16 %v279
    %v1026 = vunpack.c.h.b16 %v279
    %v1027 = vunpack.c.l.b16 %v280
    %v1028 = vunpack.c.h.b16 %v280
    %v1029 = vunpack.c.l.b16 %v281
    %v1030 = vunpack.c.h.b16 %v281
    %v1031 = vunpack.c.l.b16 %v282
    %v1032 = vunpack.c.h.b16 %v282
    %v1033 = vunpack.c.l.b16 %v283
    %v1034 = vunpack.c.h.b16 %v283
    %v1035 = vunpack.c.l.b16 %v284
    %v1036 = vunpack.c.h.b16 %v284
    %v1037 = vunpack.c.l.b16 %v285
    %v1038 = vunpack.c.h.b16 %v285
    %v1039 = vunpack.c.l.b16 %v286
    %v1040 = vunpack.c.h.b16 %v286
    %v1041 = vunpack.c.l.b16 %v287
    %v1042 = vunpack.c.h.b16 %v287
    %v1043 = vunpack.c.l.b16 %v288
    %v1044 = vunpack.c.h.b16 %v288
    %v1045 = vunpack.c.l.b16 %v289
    %v1046 = vunpack.c.h.b16 %v289
    %v1047 = vunpack.c.l.b16 %v290
    %v1048 = vunpack.c.h.b16 %v290
    %v1049 = vunpack.c.l.b16 %v291
    %v1050 = vunpack.c.h.b16 %v291
    %v1051 = vunpack.c.l.b16 %v292
    %v1052 = vunpack.c.h.b16 %v292
    %v1053 = vunpack.c.l.b16 %v293
    %v1054 = vunpack.c.h.b16 %v293
    %v1055 = vunpack.c.l.b16 %v294
    %v1056 = vunpack.c.h.b16 %v294
    %v1057 = vunpack.c.l.b16 %v295
    %v1058 = vunpack.c.h.b16 %v295
    %v1059 = vunpack.c.l.b16 %v296
    %v1060 = vunpack.c.h.b16 %v296
    %v1061 = vunpack.c.l.b16 %v297
    %v1062 = vunpack.c.h.b16 %v297
    %v1063 = vunpack.c.l.b16 %v298
    %v1064 = vunpack.c.h.b16 %v298
    %v1065 = vunpack.c.l.b16 %v299
    %v1066 = vunpack.c.h.b16 %v299
    %v1067 = vunpack.c.l.b16 %v300
    %v1068 = vunpack.c.h.b16 %v300
    %v1069 = vunpack.c.l.b16 %v301
    %v1070 = vunpack.c.h.b16 %v301
    %v1071 = vunpack.c.l.b16 %v302
    %v1072 = vunpack.c.h.b16 %v302
    %v1073 = vunpack.c.l.b16 %v303
    %v1074 = vunpack.c.h.b16 %v303
    %v1075 = vunpack.c.l.b16 %v304
    %v1076 = vunpack.c.h.b16 %v304
    %v1077 = vunpack.c.l.b16 %v305
    %v1078 = vunpack.c.h.b16 %v305
    %v1079 = vunpack.c.l.b16 %v306
    %v1080 = vunpack.c.h.b16 %v306
    %v1081 = vunpack.c.l.b16 %v307
    %v1082 = vunpack.c.h.b16 %v307
    %v1083 = vunpack.c.l.b16 %v308
    %v1084 = vunpack.c.h.b16 %v308
    %v1085 = vunpack.c.l.b16 %v309
    %v1086 = vunpack.c.h.b16 %v309
    %v1087 = vunpack.c.l.b16 %v310
    %v1088 = vunpack.c.h.b16 %v310
    %v1089 = vunpack.c.l.b16 %v311
    %v1090 = vunpack.c.h.b16 %v311
    %v1091 = vunpack.c.l.b16 %v312
    %v1092 = vunpack.c.h.b16 %v312
    %v1093 = vunpack.c.l.b16 %v313
    %v1094 = vunpack.c.h.b16 %v313
    %v1095 = vunpack.c.l.b16 %v314
    %v1096 = vunpack.c.h.b16 %v314
    %v1097 = vunpack.c.l.b16 %v315
    %v1098 = vunpack.c.h.b16 %v315
    %v1099 = vunpack.c.l.b16 %v316
    %v1100 = vunpack.c.h.b16 %v316
    %v1101 = vunpack.c.l.b16 %v317
    %v1102 = vunpack.c.h.b16 %v317
    %v1103 = vunpack.c.l.b16 %v318
    %v1104 = vunpack.c.h.b16 %v318
    %v1105 = vunpack.c.l.b16 %v319
    %v1106 = vunpack.c.h.b16 %v319
    %v1107 = vunpack.c.l.b16 %v320
    %v1108 = vunpack.c.h.b16 %v320
    %v1109 = vunpack.c.l.b16 %v321
    %v1110 = vunpack.c.h.b16 %v321
    %v1111 = vunpack.c.l.b16 %v322
    %v1112 = vunpack.c.h.b16 %v322
    %v1113 = vunpack.c.l.b16 %v323
    %v1114 = vunpack.c.h.b16 %v323
    %v1115 = vunpack.c.l.b16 %v324
    %v1116 = vunpack.c.h.b16 %v324
    %v1117 = vunpack.c.l.b16 %v325
    %v1118 = vunpack.c.h.b16 %v325
    %v1119 = vunpack.c.l.b16 %v326
    %v1120 = vunpack.c.h.b16 %v326
    %v1121 = vunpack.c.l.b16 %v327
    %v1122 = vunpack.c.h.b16 %v327
    %v1123 = vunpack.c.l.b16 %v328
    %v1124 = vunpack.c.h.b16 %v328
    %v1125 = vunpack.c.l.b16 %v329
    %v1126 = vunpack.c.h.b16 %v329
    %v1127 = vunpack.c.l.b16 %v330
    %v1128 = vunpack.c.h.b16 %v330
    %v1129 = vunpack.c.l.b16 %v331
    %v1130 = vunpack.c.h.b16 %v331
    %v1131 = vunpack.c.l.b16 %v332
    %v1132 = vunpack.c.h.b16 %v332
    %v1133 = vunpack.c.l.b16 %v333
    %v1134 = vunpack.c.h.b16 %v333
    %v1135 = vunpack.c.l.b16 %v334
    %v1136 = vunpack.c.h.b16 %v334
    %v1137 = vunpack.c.l.b16 %v335
    %v1138 = vunpack.c.h.b16 %v335
    %v1139 = vunpack.c.l.b16 %v336
    %v1140 = vunpack.c.h.b16 %v336
    %v1141 = vunpack.c.l.b16 %v337
    %v1142 = vunpack.c.h.b16 %v337
    %v1143 = vunpack.c.l.b16 %v338
    %v1144 = vunpack.c.h.b16 %v338
    %v1145 = vunpack.c.l.b16 %v339
    %v1146 = vunpack.c.h.b16 %v339
    %v1147 = vunpack.c.l.b16 %v340
    %v1148 = vunpack.c.h.b16 %v340
    %v1149 = vunpack.c.l.b16 %v341
    %v1150 = vunpack.c.h.b16 %v341
    %v1151 = vunpack.c.l.b16 %v342
    %v1152 = vunpack.c.h.b16 %v342
    %v1153 = vunpack.c.l.b16 %v343
    %v1154 = vunpack.c.h.b16 %v343
    %v1155 = vunpack.c.l.b16 %v344
    %v1156 = vunpack.c.h.b16 %v344
    %v1157 = vunpack.c.l.b16 %v345
    %v1158 = vunpack.c.h.b16 %v345
    %v1159 = vunpack.c.l.b16 %v346
    %v1160 = vunpack.c.h.b16 %v346
    %v1161 = vunpack.c.l.b16 %v347
    %v1162 = vunpack.c.h.b16 %v347
    %v1163 = vunpack.c.l.b16 %v348
    %v1164 = vunpack.c.h.b16 %v348
    %v1165 = vunpack.c.l.b16 %v349
    %v1166 = vunpack.c.h.b16 %v349
    %v1167 = vunpack.c.l.b16 %v350
    %v1168 = vunpack.c.h.b16 %v350
    %v1169 = vpack.c.b16 %v661, %v657
    %v1170 = vpack.c.b16 %v662, %v658
    %v1171 = vpack.c.b16 %v663, %v659
    %v1172 = vpack.c.b16 %v664, %v660
    %v1173 = vpack.c.b16 %v669, %v665
    %v1174 = vpack.c.b16 %v670, %v666
    %v1175 = vpack.c.b16 %v671, %v667
    %v1176 = vpack.c.b16 %v672, %v668
    %v1177 = vpack.c.b16 %v677, %v673
    %v1178 = vpack.c.b16 %v678, %v674
    %v1179 = vpack.c.b16 %v679, %v675
    %v1180 = vpack.c.b16 %v680, %v676
    %v1181 = vpack.c.b16 %v685, %v681
    %v1182 = vpack.c.b16 %v686, %v682
    %v1183 = vpack.c.b16 %v687, %v683
    %v1184 = vpack.c.b16 %v688, %v684
    %v1185 = vpack.c.b16 %v693, %v689
    %v1186 = vpack.c.b16 %v694, %v690
    %v1187 = vpack.c.b16 %v695, %v691
    %v1188 = vpack.c.b16 %v696, %v692
    %v1189 = vpack.c.b16 %v701, %v697
    %v1190 = vpack.c.b16 %v702, %v698
    %v1191 = vpack.c.b16 %v703, %v699
    %v1192 = vpack.c.b16 %v704, %v700
    %v1193 = vpack.c.b16 %v709, %v705
    %v1194 = vpack.c.b16 %v710, %v706
    %v1195 = vpack.c.b16 %v711, %v707
    %v1196 = vpack.c.b16 %v712, %v708
    %v1197 = vpack.c.b16 %v717, %v713
    %v1198 = vpack.c.b16 %v718, %v714
    %v1199 = vpack.c.b16 %v719, %v715
    %v1200 = vpack.c.b16 %v720, %v716
    %v1201 = vpack.c.b16 %v725, %v721
    %v1202 = vpack.c.b16 %v726, %v722
    %v1203 = vpack.c.b16 %v727, %v723
    %v1204 = vpack.c.b16 %v728, %v724
    %v1205 = vpack.c.b16 %v733, %v729
    %v1206 = vpack.c.b16 %v734, %v730
    %v1207 = vpack.c.b16 %v735, %v731
    %v1208 = vpack.c.b16 %v736, %v732
    %v1209 = vpack.c.b16 %v741, %v737
    %v1210 = vpack.c.b16 %v742, %v738
    %v1211 = vpack.c.b16 %v743, %v739
    %v1212 = vpack.c.b16 %v744, %v740
    %v1213 = vpack.c.b16 %v749, %v745
    %v1214 = vpack.c.b16 %v750, %v746
    %v1215 = vpack.c.b16 %v751, %v747
    %v1216 = vpack.c.b16 %v752, %v748
    %v1217 = vpack.c.b16 %v757, %v753
    %v1218 = vpack.c.b16 %v758, %v754
    %v1219 = vpack.c.b16 %v759, %v755
    %v1220 = vpack.c.b16 %v760, %v756
    %v1221 = vpack.c.b16 %v765, %v761
    %v1222 = vpack.c.b16 %v766, %v762
    %v1223 = vpack.c.b16 %v767, %v763
    %v1224 = vpack.c.b16 %v768, %v764
    %v1225 = vpack.c.b16 %v773, %v769
    %v1226 = vpack.c.b16 %v774, %v770
    %v1227 = vpack.c.b16 %v775, %v771
    %v1228 = vpack.c.b16 %v776, %v772
    %v1229 = vpack.c.b16 %v781, %v777
    %v1230 = vpack.c.b16 %v782, %v778
    %v1231 = vpack.c.b16 %v783, %v779
    %v1232 = vpack.c.b16 %v784, %v780
    %v1233 = vpack.c.b16 %v789, %v785
    %v1234 = vpack.c.b16 %v790, %v786
    %v1235 = vpack.c.b16 %v791, %v787
    %v1236 = vpack.c.b16 %v792, %v788
    %v1237 = vpack.c.b16 %v797, %v793
    %v1238 = vpack.c.b16 %v798, %v794
    %v1239 = vpack.c.b16 %v799, %v795
    %v1240 = vpack.c.b16 %v800, %v796
    %v1241 = vpack.c.b16 %v805, %v801
    %v1242 = vpack.c.b16 %v806, %v802
    %v1243 = vpack.c.b16 %v807, %v803
    %v1244 = vpack.c.b16 %v808, %v804
    %v1245 = vpack.c.b16 %v813, %v809
    %v1246 = vpack.c.b16 %v814, %v810
    %v1247 = vpack.c.b16 %v815, %v811
    %v1248 = vpack.c.b16 %v816, %v812
    %v1249 = vpack.c.b16 %v821, %v817
    %v1250 = vpack.c.b16 %v822, %v818
    %v1251 = vpack.c.b16 %v823, %v819
    %v1252 = vpack.c.b16 %v824, %v820
    %v1253 = vpack.c.b16 %v829, %v825
    %v1254 = vpack.c.b16 %v830, %v826
    %v1255 = vpack.c.b16 %v831, %v827
    %v1256 = vpack.c.b16 %v832, %v828
    %v1257 = vpack.c.b16 %v837, %v833
    %v1258 = vpack.c.b16 %v838, %v834
    %v1259 = vpack.c.b16 %v839, %v835
    %v1260 = vpack.c.b16 %v840, %v836
    %v1261 = vpack.c.b16 %v845, %v841
    %v1262 = vpack.c.b16 %v846, %v842
    %v1263 = vpack.c.b16 %v847, %v843
    %v1264 = vpack.c.b16 %v848, %v844
    %v1265 = vpack.c.b16 %v853, %v849
    %v1266 = vpack.c.b16 %v854, %v850
    %v1267 = vpack.c.b16 %v855, %v851
    %v1268 = vpack.c.b16 %v856, %v852
    %v1269 = vpack.c.b16 %v861, %v857
    %v1270 = vpack.c.b16 %v862, %v858
    %v1271 = vpack.c.b16 %v863, %v859
    %v1272 = vpack.c.b16 %v864, %v860
    %v1273 = vpack.c.b16 %v869, %v865
    %v1274 = vpack.c.b16 %v870, %v866
    %v1275 = vpack.c.b16 %v871, %v867
    %v1276 = vpack.c.b16 %v872, %v868
    %v1277 = vpack.c.b16 %v877, %v873
    %v1278 = vpack.c.b16 %v878, %v874
    %v1279 = vpack.c.b16 %v879, %v875
    %v1280 = vpack.c.b16 %v880, %v876
    %v1281 = vpack.c.b16 %v885, %v881
    %v1282 = vpack.c.b16 %v886, %v882
    %v1283 = vpack.c.b16 %v887, %v883
    %v1284 = vpack.c.b16 %v888, %v884
    %v1285 = vpack.c.b16 %v893, %v889
    %v1286 = vpack.c.b16 %v894, %v890
    %v1287 = vpack.c.b16 %v895, %v891
    %v1288 = vpack.c.b16 %v896, %v892
    %v1289 = vpack.c.b16 %v901, %v897
    %v1290 = vpack.c.b16 %v902, %v898
    %v1291 = vpack.c.b16 %v903, %v899
    %v1292 = vpack.c.b16 %v904, %v900
    %v1293 = vpack.c.b16 %v909, %v905
    %v1294 = vpack.c.b16 %v910, %v906
    %v1295 = vpack.c.b16 %v911, %v907
    %v1296 = vpack.c.b16 %v912, %v908
    %v1297 = vpack.c.b16 %v917, %v913
    %v1298 = vpack.c.b16 %v918, %v914
    %v1299 = vpack.c.b16 %v919, %v915
    %v1300 = vpack.c.b16 %v920, %v916
    %v1301 = vpack.c.b16 %v925, %v921
    %v1302 = vpack.c.b16 %v926, %v922
    %v1303 = vpack.c.b16 %v927, %v923
    %v1304 = vpack.c.b16 %v928, %v924
    %v1305 = vpack.c.b16 %v933, %v929
    %v1306 = vpack.c.b16 %v934, %v930
    %v1307 = vpack.c.b16 %v935, %v931
    %v1308 = vpack.c.b16 %v936, %v932
    %v1309 = vpack.c.b16 %v941, %v937
    %v1310 = vpack.c.b16 %v942, %v938
    %v1311 = vpack.c.b16 %v943, %v939
    %v1312 = vpack.c.b16 %v944, %v940
    %v1313 = vpack.c.b16 %v949, %v945
    %v1314 = vpack.c.b16 %v950, %v946
    %v1315 = vpack.c.b16 %v951, %v947
    %v1316 = vpack.c.b16 %v952, %v948
    %v1317 = vpack.c.b16 %v957, %v953
    %v1318 = vpack.c.b16 %v958, %v954
    %v1319 = vpack.c.b16 %v959, %v955
    %v1320 = vpack.c.b16 %v960, %v956
    %v1321 = vpack.c.b16 %v965, %v961
    %v1322 = vpack.c.b16 %v966, %v962
    %v1323 = vpack.c.b16 %v967, %v963
    %v1324 = vpack.c.b16 %v968, %v964
    %v1325 = vpack.c.b16 %v973, %v969
    %v1326 = vpack.c.b16 %v974, %v970
    %v1327 = vpack.c.b16 %v975, %v971
    %v1328 = vpack.c.b16 %v976, %v972
    %v1329 = vpack.c.b16 %v981, %v977
    %v1330 = vpack.c.b16 %v982, %v978
    %v1331 = vpack.c.b16 %v983, %v979
    %v1332 = vpack.c.b16 %v984, %v980
    %v1333 = vpack.c.b16 %v989, %v985
    %v1334 = vpack.c.b16 %v990, %v986
    %v1335 = vpack.c.b16 %v991, %v987
    %v1336 = vpack.c.b16 %v992, %v988
    %v1337 = vpack.c.b16 %v997, %v993
    %v1338 = vpack.c.b16 %v998, %v994
    %v1339 = vpack.c.b16 %v999, %v995
    %v1340 = vpack.c.b16 %v1000, %v996
    %v1341 = vpack.c.b16 %v1005, %v1001
    %v1342 = vpack.c.b16 %v1006, %v1002
    %v1343 = vpack.c.b16 %v1007, %v1003
    %v1344 = vpack.c.b16 %v1008, %v1004
    %v1345 = vpack.c.b16 %v1013, %v1009
    %v1346 = vpack.c.b16 %v1014, %v1010
    %v1347 = vpack.c.b16 %v1015, %v1011
    %v1348 = vpack.c.b16 %v1016, %v1012
    %v1349 = vpack.c.b16 %v1021, %v1017
    %v1350 = vpack.c.b16 %v1022, %v1018
    %v1351 = vpack.c.b16 %v1023, %v1019
    %v1352 = vpack.c.b16 %v1024, %v1020
    %v1353 = vpack.c.b16 %v1029, %v1025
    %v1354 = vpack.c.b16 %v1030, %v1026
    %v1355 = vpack.c.b16 %v1031, %v1027
    %v1356 = vpack.c.b16 %v1032, %v1028
    %v1357 = vpack.c.b16 %v1037, %v1033
    %v1358 = vpack.c.b16 %v1038, %v1034
    %v1359 = vpack.c.b16 %v1039, %v1035
    %v1360 = vpack.c.b16 %v1040, %v1036
    %v1361 = vpack.c.b16 %v1045, %v1041
    %v1362 = vpack.c.b16 %v1046, %v1042
    %v1363 = vpack.c.b16 %v1047, %v1043
    %v1364 = vpack.c.b16 %v1048, %v1044
    %v1365 = vpack.c.b16 %v1053, %v1049
    %v1366 = vpack.c.b16 %v1054, %v1050
    %v1367 = vpack.c.b16 %v1055, %v1051
    %v1368 = vpack.c.b16 %v1056, %v1052
    %v1369 = vpack.c.b16 %v1061, %v1057
    %v1370 = vpack.c.b16 %v1062, %v1058
    %v1371 = vpack.c.b16 %v1063, %v1059
    %v1372 = vpack.c.b16 %v1064, %v1060
    %v1373 = vpack.c.b16 %v1069, %v1065
    %v1374 = vpack.c.b16 %v1070, %v1066
    %v1375 = vpack.c.b16 %v1071, %v1067
    %v1376 = vpack.c.b16 %v1072, %v1068
    %v1377 = vpack.c.b16 %v1077, %v1073
    %v1378 = vpack.c.b16 %v1078, %v1074
    %v1379 = vpack.c.b16 %v1079, %v1075
    %v1380 = vpack.c.b16 %v1080, %v1076
    %v1381 = vpack.c.b16 %v1085, %v1081
    %v1382 = vpack.c.b16 %v1086, %v1082
    %v1383 = vpack.c.b16 %v1087, %v1083
    %v1384 = vpack.c.b16 %v1088, %v1084
    %v1385 = vpack.c.b16 %v1093, %v1089
    %v1386 = vpack.c.b16 %v1094, %v1090
    %v1387 = vpack.c.b16 %v1095, %v1091
    %v1388 = vpack.c.b16 %v1096, %v1092
    %v1389 = vpack.c.b16 %v1101, %v1097
    %v1390 = vpack.c.b16 %v1102, %v1098
    %v1391 = vpack.c.b16 %v1103, %v1099
    %v1392 = vpack.c.b16 %v1104, %v1100
    %v1393 = vpack.c.b16 %v1109, %v1105
    %v1394 = vpack.c.b16 %v1110, %v1106
    %v1395 = vpack.c.b16 %v1111, %v1107
    %v1396 = vpack.c.b16 %v1112, %v1108
    %v1397 = vpack.c.b16 %v1117, %v1113
    %v1398 = vpack.c.b16 %v1118, %v1114
    %v1399 = vpack.c.b16 %v1119, %v1115
    %v1400 = vpack.c.b16 %v1120, %v1116
    %v1401 = vpack.c.b16 %v1125, %v1121
    %v1402 = vpack.c.b16 %v1126, %v1122
    %v1403 = vpack.c.b16 %v1127, %v1123
    %v1404 = vpack.c.b16 %v1128, %v1124
    %v1405 = vpack.c.b16 %v1133, %v1129
    %v1406 = vpack.c.b16 %v1134, %v1130
    %v1407 = vpack.c.b16 %v1135, %v1131
    %v1408 = vpack.c.b16 %v1136, %v1132
    %v1409 = vpack.c.b16 %v1141, %v1137
    %v1410 = vpack.c.b16 %v1142, %v1138
    %v1411 = vpack.c.b16 %v1143, %v1139
    %v1412 = vpack.c.b16 %v1144, %v1140
    %v1413 = vpack.c.b16 %v1149, %v1145
    %v1414 = vpack.c.b16 %v1150, %v1146
    %v1415 = vpack.c.b16 %v1151, %v1147
    %v1416 = vpack.c.b16 %v1152, %v1148
    %v1417 = vpack.c.b16 %v1157, %v1153
    %v1418 = vpack.c.b16 %v1158, %v1154
    %v1419 = vpack.c.b16 %v1159, %v1155
    %v1420 = vpack.c.b16 %v1160, %v1156
    %v1421 = vpack.c.b16 %v1165, %v1161
    %v1422 = vpack.c.b16 %v1166, %v1162
    %v1423 = vpack.c.b16 %v1167, %v1163
    %v1424 = vpack.c.b16 %v1168, %v1164
    %1681 = vmatprep.subr.bf16.mxu0 %v1170
    %1682 = vmatpush1.bf16.msra.mxu0 %v1169
    %1683 = vmatprep.subr.bf16.mxu0 %v1174
    %1684 = vmatpush1.bf16.msra.mxu0 %v1173
    %1685 = vmatprep.subr.bf16.mxu0 %v1178
    %1686 = vmatpush1.bf16.msra.mxu0 %v1177
    %1687 = vmatprep.subr.bf16.mxu0 %v1182
    %1688 = vmatpush1.bf16.msra.mxu0 %v1181
    %1689 = vmatprep.subr.bf16.mxu0 %v1186
    %1690 = vmatpush1.bf16.msra.mxu0 %v1185
    %1691 = vmatprep.subr.bf16.mxu0 %v1190
    %1692 = vmatpush1.bf16.msra.mxu0 %v1189
    %1693 = vmatprep.subr.bf16.mxu0 %v1194
    %1694 = vmatpush1.bf16.msra.mxu0 %v1193
    %1695 = vmatprep.subr.bf16.mxu0 %v1198
    %1696 = vmatpush1.bf16.msra.mxu0 %v1197
    %1697 = vmatprep.subr.bf16.mxu0 %v1202
    %1698 = vmatpush1.bf16.msra.mxu0 %v1201
    %1699 = vmatprep.subr.bf16.mxu0 %v1206
    %1700 = vmatpush1.bf16.msra.mxu0 %v1205
    %1701 = vmatprep.subr.bf16.mxu0 %v1210
    %1702 = vmatpush1.bf16.msra.mxu0 %v1209
    %1703 = vmatprep.subr.bf16.mxu0 %v1214
    %1704 = vmatpush1.bf16.msra.mxu0 %v1213
    %1705 = vmatprep.subr.bf16.mxu0 %v1218
    %1706 = vmatpush1.bf16.msra.mxu0 %v1217
    %1707 = vmatprep.subr.bf16.mxu0 %v1222
    %1708 = vmatpush1.bf16.msra.mxu0 %v1221
    %1709 = vmatprep.subr.bf16.mxu0 %v1226
    %1710 = vmatpush1.bf16.msra.mxu0 %v1225
    %1711 = vmatprep.subr.bf16.mxu0 %v1230
    %1712 = vmatpush1.bf16.msra.mxu0 %v1229
    %1713 = vmatprep.mubr.bf16.mxu0 %v386
    %1714 = vmatmul.mubr.bf16.gmra.mrb[0].mxu0 %v385
    %v1715 = vpop.f32.mrb[0].mxu0
    %v1716 = vadd.f32 %v356, %v1715
    %v1717 = vpop.f32.mrb[0].mxu0
    %v1718 = vadd.f32 %v360, %v1717
    %v1719 = vpop.f32.mrb[0].mxu0
    %v1720 = vpop.f32.mrb[0].mxu0
    %1721 = vdwg.mxu0
    %1722 = vmatprep.subr.bf16.mxu0 %v1234
    %1723 = vmatpush1.bf16.msra.mxu0 %v1233
    %1724 = vmatprep.subr.bf16.mxu0 %v1238
    %1725 = vmatpush1.bf16.msra.mxu0 %v1237
    %1726 = vmatprep.subr.bf16.mxu0 %v1242
    %1727 = vmatpush1.bf16.msra.mxu0 %v1241
    %1728 = vmatprep.subr.bf16.mxu0 %v1246
    %1729 = vmatpush1.bf16.msra.mxu0 %v1245
    %1730 = vmatprep.subr.bf16.mxu0 %v1250
    %1731 = vmatpush1.bf16.msra.mxu0 %v1249
    %1732 = vmatprep.subr.bf16.mxu0 %v1254
    %1733 = vmatpush1.bf16.msra.mxu0 %v1253
    %1734 = vmatprep.subr.bf16.mxu0 %v1258
    %1735 = vmatpush1.bf16.msra.mxu0 %v1257
    %1736 = vmatprep.subr.bf16.mxu0 %v1262
    %1737 = vmatpush1.bf16.msra.mxu0 %v1261
    %1738 = vmatprep.subr.bf16.mxu0 %v1266
    %1739 = vmatpush1.bf16.msra.mxu0 %v1265
    %1740 = vmatprep.subr.bf16.mxu0 %v1270
    %1741 = vmatpush1.bf16.msra.mxu0 %v1269
    %1742 = vmatprep.subr.bf16.mxu0 %v1274
    %1743 = vmatpush1.bf16.msra.mxu0 %v1273
    %1744 = vmatprep.subr.bf16.mxu0 %v1278
    %1745 = vmatpush1.bf16.msra.mxu0 %v1277
    %1746 = vmatprep.subr.bf16.mxu0 %v1282
    %1747 = vmatpush1.bf16.msra.mxu0 %v1281
    %1748 = vmatprep.subr.bf16.mxu0 %v1286
    %1749 = vmatpush1.bf16.msra.mxu0 %v1285
    %1750 = vmatprep.subr.bf16.mxu0 %v1290
    %1751 = vmatpush1.bf16.msra.mxu0 %v1289
    %1752 = vmatprep.subr.bf16.mxu0 %v1294
    %1753 = vmatpush1.bf16.msra.mxu0 %v1293
    %1754 = vmatprep.mubr.bf16.mxu0 %v388
    %1755 = vmatmul.mubr.bf16.gmra.mrb[0].mxu0 %v387
    %v1756 = vpop.f32.mrb[0].mxu0
    %v1757 = vadd.f32 %v1716, %v1756
    %v1758 = vpop.f32.mrb[0].mxu0
    %v1759 = vadd.f32 %v1718, %v1758
    %v1760 = vpop.f32.mrb[0].mxu0
    %v1761 = vpop.f32.mrb[0].mxu0
    %1762 = vdwg.mxu0
    %1763 = vmatprep.subr.bf16.mxu0 %v1298
    %1764 = vmatpush1.bf16.msra.mxu0 %v1297
    %1765 = vmatprep.subr.bf16.mxu0 %v1302
    %1766 = vmatpush1.bf16.msra.mxu0 %v1301
    %1767 = vmatprep.subr.bf16.mxu0 %v1306
    %1768 = vmatpush1.bf16.msra.mxu0 %v1305
    %1769 = vmatprep.subr.bf16.mxu0 %v1310
    %1770 = vmatpush1.bf16.msra.mxu0 %v1309
    %1771 = vmatprep.subr.bf16.mxu0 %v1314
    %1772 = vmatpush1.bf16.msra.mxu0 %v1313
    %1773 = vmatprep.subr.bf16.mxu0 %v1318
    %1774 = vmatpush1.bf16.msra.mxu0 %v1317
    %1775 = vmatprep.subr.bf16.mxu0 %v1322
    %1776 = vmatpush1.bf16.msra.mxu0 %v1321
    %1777 = vmatprep.subr.bf16.mxu0 %v1326
    %1778 = vmatpush1.bf16.msra.mxu0 %v1325
    %1779 = vmatprep.subr.bf16.mxu0 %v1330
    %1780 = vmatpush1.bf16.msra.mxu0 %v1329
    %1781 = vmatprep.subr.bf16.mxu0 %v1334
    %1782 = vmatpush1.bf16.msra.mxu0 %v1333
    %1783 = vmatprep.subr.bf16.mxu0 %v1338
    %1784 = vmatpush1.bf16.msra.mxu0 %v1337
    %1785 = vmatprep.subr.bf16.mxu0 %v1342
    %1786 = vmatpush1.bf16.msra.mxu0 %v1341
    %1787 = vmatprep.subr.bf16.mxu0 %v1346
    %1788 = vmatpush1.bf16.msra.mxu0 %v1345
    %1789 = vmatprep.subr.bf16.mxu0 %v1350
    %1790 = vmatpush1.bf16.msra.mxu0 %v1349
    %1791 = vmatprep.subr.bf16.mxu0 %v1354
    %1792 = vmatpush1.bf16.msra.mxu0 %v1353
    %1793 = vmatprep.subr.bf16.mxu0 %v1358
    %1794 = vmatpush1.bf16.msra.mxu0 %v1357
    %1795 = vmatprep.mubr.bf16.mxu0 %v390
    %1796 = vmatmul.mubr.bf16.gmra.mrb[0].mxu0 %v389
    %v1797 = vpop.f32.mrb[0].mxu0
    %v1798 = vadd.f32 %v1757, %v1797
    %v1799 = vpop.f32.mrb[0].mxu0
    %v1800 = vadd.f32 %v1759, %v1799
    %v1801 = vpop.f32.mrb[0].mxu0
    %v1802 = vpop.f32.mrb[0].mxu0
    %1803 = vdwg.mxu0
    %1804 = vmatprep.subr.bf16.mxu0 %v1362
    %1805 = vmatpush1.bf16.msra.mxu0 %v1361
    %1806 = vmatprep.subr.bf16.mxu0 %v1366
    %1807 = vmatpush1.bf16.msra.mxu0 %v1365
    %1808 = vmatprep.subr.bf16.mxu0 %v1370
    %1809 = vmatpush1.bf16.msra.mxu0 %v1369
    %1810 = vmatprep.subr.bf16.mxu0 %v1374
    %1811 = vmatpush1.bf16.msra.mxu0 %v1373
    %1812 = vmatprep.subr.bf16.mxu0 %v1378
    %1813 = vmatpush1.bf16.msra.mxu0 %v1377
    %1814 = vmatprep.subr.bf16.mxu0 %v1382
    %1815 = vmatpush1.bf16.msra.mxu0 %v1381
    %1816 = vmatprep.subr.bf16.mxu0 %v1386
    %1817 = vmatpush1.bf16.msra.mxu0 %v1385
    %1818 = vmatprep.subr.bf16.mxu0 %v1390
    %1819 = vmatpush1.bf16.msra.mxu0 %v1389
    %1820 = vmatprep.subr.bf16.mxu0 %v1394
    %1821 = vmatpush1.bf16.msra.mxu0 %v1393
    %1822 = vmatprep.subr.bf16.mxu0 %v1398
    %1823 = vmatpush1.bf16.msra.mxu0 %v1397
    %1824 = vmatprep.subr.bf16.mxu0 %v1402
    %1825 = vmatpush1.bf16.msra.mxu0 %v1401
    %1826 = vmatprep.subr.bf16.mxu0 %v1406
    %1827 = vmatpush1.bf16.msra.mxu0 %v1405
    %1828 = vmatprep.subr.bf16.mxu0 %v1410
    %1829 = vmatpush1.bf16.msra.mxu0 %v1409
    %1830 = vmatprep.subr.bf16.mxu0 %v1414
    %1831 = vmatpush1.bf16.msra.mxu0 %v1413
    %1832 = vmatprep.subr.bf16.mxu0 %v1418
    %1833 = vmatpush1.bf16.msra.mxu0 %v1417
    %1834 = vmatprep.subr.bf16.mxu0 %v1422
    %1835 = vmatpush1.bf16.msra.mxu0 %v1421
    %1836 = vmatprep.mubr.bf16.mxu0 %v392
    %1837 = vmatmul.mubr.bf16.gmra.mrb[0].mxu0 %v391
    %v1838 = vpop.f32.mrb[0].mxu0
    %v1839 = vadd.f32 %v1798, %v1838
    %v1840 = vpop.f32.mrb[0].mxu0
    %v1841 = vadd.f32 %v1800, %v1840
    %v1842 = vpop.f32.mrb[0].mxu0
    %v1843 = vpop.f32.mrb[0].mxu0
    %1844 = vdwg.mxu0
    %1845 = vmatprep.subr.bf16.mxu0 %v1172
    %1846 = vmatpush1.bf16.msra.mxu0 %v1171
    %1847 = vmatprep.subr.bf16.mxu0 %v1176
    %1848 = vmatpush1.bf16.msra.mxu0 %v1175
    %1849 = vmatprep.subr.bf16.mxu0 %v1180
    %1850 = vmatpush1.bf16.msra.mxu0 %v1179
    %1851 = vmatprep.subr.bf16.mxu0 %v1184
    %1852 = vmatpush1.bf16.msra.mxu0 %v1183
    %1853 = vmatprep.subr.bf16.mxu0 %v1188
    %1854 = vmatpush1.bf16.msra.mxu0 %v1187
    %1855 = vmatprep.subr.bf16.mxu0 %v1192
    %1856 = vmatpush1.bf16.msra.mxu0 %v1191
    %1857 = vmatprep.subr.bf16.mxu0 %v1196
    %1858 = vmatpush1.bf16.msra.mxu0 %v1195
    %1859 = vmatprep.subr.bf16.mxu0 %v1200
    %1860 = vmatpush1.bf16.msra.mxu0 %v1199
    %1861 = vmatprep.subr.bf16.mxu0 %v1204
    %1862 = vmatpush1.bf16.msra.mxu0 %v1203
    %1863 = vmatprep.subr.bf16.mxu0 %v1208
    %1864 = vmatpush1.bf16.msra.mxu0 %v1207
    %1865 = vmatprep.subr.bf16.mxu0 %v1212
    %1866 = vmatpush1.bf16.msra.mxu0 %v1211
    %1867 = vmatprep.subr.bf16.mxu0 %v1216
    %1868 = vmatpush1.bf16.msra.mxu0 %v1215
    %1869 = vmatprep.subr.bf16.mxu0 %v1220
    %1870 = vmatpush1.bf16.msra.mxu0 %v1219
    %1871 = vmatprep.subr.bf16.mxu0 %v1224
    %1872 = vmatpush1.bf16.msra.mxu0 %v1223
    %1873 = vmatprep.subr.bf16.mxu0 %v1228
    %1874 = vmatpush1.bf16.msra.mxu0 %v1227
    %1875 = vmatprep.subr.bf16.mxu0 %v1232
    %1876 = vmatpush1.bf16.msra.mxu0 %v1231
    %1877 = vmatprep.mubr.bf16.mxu0 %v386
    %1878 = vmatmul.mubr.bf16.gmra.mrb[0].mxu0 %v385
    %v1879 = vpop.f32.mrb[0].mxu0
    %v1880 = vadd.f32 %v364, %v1879
    %v1881 = vpop.f32.mrb[0].mxu0
    %v1882 = vadd.f32 %v368, %v1881
    %v1883 = vpop.f32.mrb[0].mxu0
    %v1884 = vpop.f32.mrb[0].mxu0
    %1885 = vdwg.mxu0
    %1886 = vmatprep.subr.bf16.mxu0 %v1236
    %1887 = vmatpush1.bf16.msra.mxu0 %v1235
    %1888 = vmatprep.subr.bf16.mxu0 %v1240
    %1889 = vmatpush1.bf16.msra.mxu0 %v1239
    %1890 = vmatprep.subr.bf16.mxu0 %v1244
    %1891 = vmatpush1.bf16.msra.mxu0 %v1243
    %1892 = vmatprep.subr.bf16.mxu0 %v1248
    %1893 = vmatpush1.bf16.msra.mxu0 %v1247
    %1894 = vmatprep.subr.bf16.mxu0 %v1252
    %1895 = vmatpush1.bf16.msra.mxu0 %v1251
    %1896 = vmatprep.subr.bf16.mxu0 %v1256
    %1897 = vmatpush1.bf16.msra.mxu0 %v1255
    %1898 = vmatprep.subr.bf16.mxu0 %v1260
    %1899 = vmatpush1.bf16.msra.mxu0 %v1259
    %1900 = vmatprep.subr.bf16.mxu0 %v1264
    %1901 = vmatpush1.bf16.msra.mxu0 %v1263
    %1902 = vmatprep.subr.bf16.mxu0 %v1268
    %1903 = vmatpush1.bf16.msra.mxu0 %v1267
    %1904 = vmatprep.subr.bf16.mxu0 %v1272
    %1905 = vmatpush1.bf16.msra.mxu0 %v1271
    %1906 = vmatprep.subr.bf16.mxu0 %v1276
    %1907 = vmatpush1.bf16.msra.mxu0 %v1275
    %1908 = vmatprep.subr.bf16.mxu0 %v1280
    %1909 = vmatpush1.bf16.msra.mxu0 %v1279
    %1910 = vmatprep.subr.bf16.mxu0 %v1284
    %1911 = vmatpush1.bf16.msra.mxu0 %v1283
    %1912 = vmatprep.subr.bf16.mxu0 %v1288
    %1913 = vmatpush1.bf16.msra.mxu0 %v1287
    %1914 = vmatprep.subr.bf16.mxu0 %v1292
    %1915 = vmatpush1.bf16.msra.mxu0 %v1291
    %1916 = vmatprep.subr.bf16.mxu0 %v1296
    %1917 = vmatpush1.bf16.msra.mxu0 %v1295
    %1918 = vmatprep.mubr.bf16.mxu0 %v388
    %1919 = vmatmul.mubr.bf16.gmra.mrb[0].mxu0 %v387
    %v1920 = vpop.f32.mrb[0].mxu0
    %v1921 = vadd.f32 %v1880, %v1920
    %v1922 = vpop.f32.mrb[0].mxu0
    %v1923 = vadd.f32 %v1882, %v1922
    %v1924 = vpop.f32.mrb[0].mxu0
    %v1925 = vpop.f32.mrb[0].mxu0
    %1926 = vdwg.mxu0
    %1927 = vmatprep.subr.bf16.mxu0 %v1300
    %1928 = vmatpush1.bf16.msra.mxu0 %v1299
    %1929 = vmatprep.subr.bf16.mxu0 %v1304
    %1930 = vmatpush1.bf16.msra.mxu0 %v1303
    %1931 = vmatprep.subr.bf16.mxu0 %v1308
    %1932 = vmatpush1.bf16.msra.mxu0 %v1307
    %1933 = vmatprep.subr.bf16.mxu0 %v1312
    %1934 = vmatpush1.bf16.msra.mxu0 %v1311
    %1935 = vmatprep.subr.bf16.mxu0 %v1316
    %1936 = vmatpush1.bf16.msra.mxu0 %v1315
    %1937 = vmatprep.subr.bf16.mxu0 %v1320
    %1938 = vmatpush1.bf16.msra.mxu0 %v1319
    %1939 = vmatprep.subr.bf16.mxu0 %v1324
    %1940 = vmatpush1.bf16.msra.mxu0 %v1323
    %1941 = vmatprep.subr.bf16.mxu0 %v1328
    %1942 = vmatpush1.bf16.msra.mxu0 %v1327
    %1943 = vmatprep.subr.bf16.mxu0 %v1332
    %1944 = vmatpush1.bf16.msra.mxu0 %v1331
    %1945 = vmatprep.subr.bf16.mxu0 %v1336
    %1946 = vmatpush1.bf16.msra.mxu0 %v1335
    %1947 = vmatprep.subr.bf16.mxu0 %v1340
    %1948 = vmatpush1.bf16.msra.mxu0 %v1339
    %1949 = vmatprep.subr.bf16.mxu0 %v1344
    %1950 = vmatpush1.bf16.msra.mxu0 %v1343
    %1951 = vmatprep.subr.bf16.mxu0 %v1348
    %1952 = vmatpush1.bf16.msra.mxu0 %v1347
    %1953 = vmatprep.subr.bf16.mxu0 %v1352
    %1954 = vmatpush1.bf16.msra.mxu0 %v1351
    %1955 = vmatprep.subr.bf16.mxu0 %v1356
    %1956 = vmatpush1.bf16.msra.mxu0 %v1355
    %1957 = vmatprep.subr.bf16.mxu0 %v1360
    %1958 = vmatpush1.bf16.msra.mxu0 %v1359
    %1959 = vmatprep.mubr.bf16.mxu0 %v390
    %1960 = vmatmul.mubr.bf16.gmra.mrb[0].mxu0 %v389
    %v1961 = vpop.f32.mrb[0].mxu0
    %v1962 = vadd.f32 %v1921, %v1961
    %v1963 = vpop.f32.mrb[0].mxu0
    %v1964 = vadd.f32 %v1923, %v1963
    %v1965 = vpop.f32.mrb[0].mxu0
    %v1966 = vpop.f32.mrb[0].mxu0
    %1967 = vdwg.mxu0
    %1968 = vmatprep.subr.bf16.mxu0 %v1364
    %1969 = vmatpush1.bf16.msra.mxu0 %v1363
    %1970 = vmatprep.subr.bf16.mxu0 %v1368
    %1971 = vmatpush1.bf16.msra.mxu0 %v1367
    %1972 = vmatprep.subr.bf16.mxu0 %v1372
    %1973 = vmatpush1.bf16.msra.mxu0 %v1371
    %1974 = vmatprep.subr.bf16.mxu0 %v1376
    %1975 = vmatpush1.bf16.msra.mxu0 %v1375
    %1976 = vmatprep.subr.bf16.mxu0 %v1380
    %1977 = vmatpush1.bf16.msra.mxu0 %v1379
    %1978 = vmatprep.subr.bf16.mxu0 %v1384
    %1979 = vmatpush1.bf16.msra.mxu0 %v1383
    %1980 = vmatprep.subr.bf16.mxu0 %v1388
    %1981 = vmatpush1.bf16.msra.mxu0 %v1387
    %1982 = vmatprep.subr.bf16.mxu0 %v1392
    %1983 = vmatpush1.bf16.msra.mxu0 %v1391
    %1984 = vmatprep.subr.bf16.mxu0 %v1396
    %1985 = vmatpush1.bf16.msra.mxu0 %v1395
    %1986 = vmatprep.subr.bf16.mxu0 %v1400
    %1987 = vmatpush1.bf16.msra.mxu0 %v1399
    %1988 = vmatprep.subr.bf16.mxu0 %v1404
    %1989 = vmatpush1.bf16.msra.mxu0 %v1403
    %1990 = vmatprep.subr.bf16.mxu0 %v1408
    %1991 = vmatpush1.bf16.msra.mxu0 %v1407
    %1992 = vmatprep.subr.bf16.mxu0 %v1412
    %1993 = vmatpush1.bf16.msra.mxu0 %v1411
    %1994 = vmatprep.subr.bf16.mxu0 %v1416
    %1995 = vmatpush1.bf16.msra.mxu0 %v1415
    %1996 = vmatprep.subr.bf16.mxu0 %v1420
    %1997 = vmatpush1.bf16.msra.mxu0 %v1419
    %1998 = vmatprep.subr.bf16.mxu0 %v1424
    %1999 = vmatpush1.bf16.msra.mxu0 %v1423
    %2000 = vmatprep.mubr.bf16.mxu0 %v392
    %2001 = vmatmul.mubr.bf16.gmra.mrb[0].mxu0 %v391
    %v2002 = vpop.f32.mrb[0].mxu0
    %v2003 = vadd.f32 %v1962, %v2002
    %v2004 = vpop.f32.mrb[0].mxu0
    %v2005 = vadd.f32 %v1964, %v2004
    %v2006 = vpop.f32.mrb[0].mxu0
    %v2007 = vpop.f32.mrb[0].mxu0
    %2008 = vdwg.mxu0
    %v2009 = vpack.c.bf16 %v1839, %v1839
    %v2010 = vpack.c.bf16 %v1841, %v1841
    %v2011 = vpack.c.bf16 %v2003, %v2003
    %v2012 = vpack.c.bf16 %v2005, %v2005
    %v2013 = vmax.bf16 %v2009, 0
    %v2014 = vmax.bf16 %v2010, 0
    %v2015 = vmax.bf16 %v2011, 0
    %v2016 = vmax.bf16 %v2012, 0
    %v2017 = vld [vmem:[#allocation7] sm:$0xff]
    %v2018 = vld [vmem:[#allocation7 + $0x8] sm:$0xff]
    %v2019 = vld [vmem:[#allocation7 + $0x10] sm:$0xff]
    %v2020 = vld [vmem:[#allocation7 + $0x18] sm:$0xff]
    %v2021 = vld [vmem:[#allocation7 + $0x20] sm:$0xff]
    %v2022 = vld [vmem:[#allocation7 + $0x28] sm:$0xff]
    %v2023 = vld [vmem:[#allocation7 + $0x30] sm:$0xff]
    %v2024 = vld [vmem:[#allocation7 + $0x38] sm:$0xff]
    %v2025 = vld [vmem:[#allocation7 + $0x40] sm:$0xff]
    %v2026 = vld [vmem:[#allocation7 + $0x48] sm:$0xff]
    %v2027 = vld [vmem:[#allocation7 + $0x50] sm:$0xff]
    %v2028 = vld [vmem:[#allocation7 + $0x58] sm:$0xff]
    %v2029 = vld [vmem:[#allocation7 + $0x60] sm:$0xff]
    %v2030 = vld [vmem:[#allocation7 + $0x68] sm:$0xff]
    %v2031 = vld [vmem:[#allocation7 + $0x70] sm:$0xff]
    %v2032 = vld [vmem:[#allocation7 + $0x78] sm:$0xff]
    %v2033 = vld [vmem:[#allocation7 + $0x80] sm:$0xff]
    %v2034 = vld [vmem:[#allocation7 + $0x88] sm:$0xff]
    %v2035 = vld [vmem:[#allocation7 + $0x90] sm:$0xff]
    %v2036 = vld [vmem:[#allocation7 + $0x98] sm:$0xff]
    %v2037 = vld [vmem:[#allocation7 + $0xa0] sm:$0xff]
    %v2038 = vld [vmem:[#allocation7 + $0xa8] sm:$0xff]
    %v2039 = vld [vmem:[#allocation7 + $0xb0] sm:$0xff]
    %v2040 = vld [vmem:[#allocation7 + $0xb8] sm:$0xff]
    %v2041 = vld [vmem:[#allocation7 + $0xc0] sm:$0xff]
    %v2042 = vld [vmem:[#allocation7 + $0xc8] sm:$0xff]
    %v2043 = vld [vmem:[#allocation7 + $0xd0] sm:$0xff]
    %v2044 = vld [vmem:[#allocation7 + $0xd8] sm:$0xff]
    %v2045 = vld [vmem:[#allocation7 + $0xe0] sm:$0xff]
    %v2046 = vld [vmem:[#allocation7 + $0xe8] sm:$0xff]
    %v2047 = vld [vmem:[#allocation7 + $0xf0] sm:$0xff]
    %v2048 = vld [vmem:[#allocation7 + $0xf8] sm:$0xff]
    %v2049 = vld [vmem:[#allocation7 + $0x100] sm:$0xff]
    %v2050 = vld [vmem:[#allocation7 + $0x108] sm:$0xff]
    %v2051 = vld [vmem:[#allocation7 + $0x110] sm:$0xff]
    %v2052 = vld [vmem:[#allocation7 + $0x118] sm:$0xff]
    %v2053 = vld [vmem:[#allocation7 + $0x120] sm:$0xff]
    %v2054 = vld [vmem:[#allocation7 + $0x128] sm:$0xff]
    %v2055 = vld [vmem:[#allocation7 + $0x130] sm:$0xff]
    %v2056 = vld [vmem:[#allocation7 + $0x138] sm:$0xff]
    %v2057 = vld [vmem:[#allocation7 + $0x140] sm:$0xff]
    %v2058 = vld [vmem:[#allocation7 + $0x148] sm:$0xff]
    %v2059 = vld [vmem:[#allocation7 + $0x150] sm:$0xff]
    %v2060 = vld [vmem:[#allocation7 + $0x158] sm:$0xff]
    %v2061 = vld [vmem:[#allocation7 + $0x160] sm:$0xff]
    %v2062 = vld [vmem:[#allocation7 + $0x168] sm:$0xff]
    %v2063 = vld [vmem:[#allocation7 + $0x170] sm:$0xff]
    %v2064 = vld [vmem:[#allocation7 + $0x178] sm:$0xff]
    %v2065 = vld [vmem:[#allocation7 + $0x180] sm:$0xff]
    %v2066 = vld [vmem:[#allocation7 + $0x188] sm:$0xff]
    %v2067 = vld [vmem:[#allocation7 + $0x190] sm:$0xff]
    %v2068 = vld [vmem:[#allocation7 + $0x198] sm:$0xff]
    %v2069 = vld [vmem:[#allocation7 + $0x1a0] sm:$0xff]
    %v2070 = vld [vmem:[#allocation7 + $0x1a8] sm:$0xff]
    %v2071 = vld [vmem:[#allocation7 + $0x1b0] sm:$0xff]
    %v2072 = vld [vmem:[#allocation7 + $0x1b8] sm:$0xff]
    %v2073 = vld [vmem:[#allocation7 + $0x1c0] sm:$0xff]
    %v2074 = vld [vmem:[#allocation7 + $0x1c8] sm:$0xff]
    %v2075 = vld [vmem:[#allocation7 + $0x1d0] sm:$0xff]
    %v2076 = vld [vmem:[#allocation7 + $0x1d8] sm:$0xff]
    %v2077 = vld [vmem:[#allocation7 + $0x1e0] sm:$0xff]
    %v2078 = vld [vmem:[#allocation7 + $0x1e8] sm:$0xff]
    %v2079 = vld [vmem:[#allocation7 + $0x1f0] sm:$0xff]
    %v2080 = vld [vmem:[#allocation7 + $0x1f8] sm:$0xff]
    %v2081 = vld [vmem:[%s5 + $0x4] sm:$0x3]
    %v2083 = vlaneseq
    %v2084 = vshrl.u32 %v2083, 7
    %v2085 = vsub.s32 0, %v2084
    %v2086 = vrot.slane %v2081, %v2085
    %v2087 = vlaneseq
    %v2088 = vshrl.u32 %v2087, 7
    %v2089 = vsub.s32 1, %v2088
    %v2090 = vrot.slane %v2081, %v2089
    %v2157 = vunpack.c.l.b16 %v2017
    %v2158 = vunpack.c.h.b16 %v2017
    %v2159 = vunpack.c.l.b16 %v2018
    %v2160 = vunpack.c.h.b16 %v2018
    %v2161 = vunpack.c.l.b16 %v2019
    %v2162 = vunpack.c.h.b16 %v2019
    %v2163 = vunpack.c.l.b16 %v2020
    %v2164 = vunpack.c.h.b16 %v2020
    %v2165 = vunpack.c.l.b16 %v2021
    %v2166 = vunpack.c.h.b16 %v2021
    %v2167 = vunpack.c.l.b16 %v2022
    %v2168 = vunpack.c.h.b16 %v2022
    %v2169 = vunpack.c.l.b16 %v2023
    %v2170 = vunpack.c.h.b16 %v2023
    %v2171 = vunpack.c.l.b16 %v2024
    %v2172 = vunpack.c.h.b16 %v2024
    %v2173 = vunpack.c.l.b16 %v2025
    %v2174 = vunpack.c.h.b16 %v2025
    %v2175 = vunpack.c.l.b16 %v2026
    %v2176 = vunpack.c.h.b16 %v2026
    %v2177 = vunpack.c.l.b16 %v2027
    %v2178 = vunpack.c.h.b16 %v2027
    %v2179 = vunpack.c.l.b16 %v2028
    %v2180 = vunpack.c.h.b16 %v2028
    %v2181 = vunpack.c.l.b16 %v2029
    %v2182 = vunpack.c.h.b16 %v2029
    %v2183 = vunpack.c.l.b16 %v2030
    %v2184 = vunpack.c.h.b16 %v2030
    %v2185 = vunpack.c.l.b16 %v2031
    %v2186 = vunpack.c.h.b16 %v2031
    %v2187 = vunpack.c.l.b16 %v2032
    %v2188 = vunpack.c.h.b16 %v2032
    %v2189 = vunpack.c.l.b16 %v2033
    %v2190 = vunpack.c.h.b16 %v2033
    %v2191 = vunpack.c.l.b16 %v2034
    %v2192 = vunpack.c.h.b16 %v2034
    %v2193 = vunpack.c.l.b16 %v2035
    %v2194 = vunpack.c.h.b16 %v2035
    %v2195 = vunpack.c.l.b16 %v2036
    %v2196 = vunpack.c.h.b16 %v2036
    %v2197 = vunpack.c.l.b16 %v2037
    %v2198 = vunpack.c.h.b16 %v2037
    %v2199 = vunpack.c.l.b16 %v2038
    %v2200 = vunpack.c.h.b16 %v2038
    %v2201 = vunpack.c.l.b16 %v2039
    %v2202 = vunpack.c.h.b16 %v2039
    %v2203 = vunpack.c.l.b16 %v2040
    %v2204 = vunpack.c.h.b16 %v2040
    %v2205 = vunpack.c.l.b16 %v2041
    %v2206 = vunpack.c.h.b16 %v2041
    %v2207 = vunpack.c.l.b16 %v2042
    %v2208 = vunpack.c.h.b16 %v2042
    %v2209 = vunpack.c.l.b16 %v2043
    %v2210 = vunpack.c.h.b16 %v2043
    %v2211 = vunpack.c.l.b16 %v2044
    %v2212 = vunpack.c.h.b16 %v2044
    %v2213 = vunpack.c.l.b16 %v2045
    %v2214 = vunpack.c.h.b16 %v2045
    %v2215 = vunpack.c.l.b16 %v2046
    %v2216 = vunpack.c.h.b16 %v2046
    %v2217 = vunpack.c.l.b16 %v2047
    %v2218 = vunpack.c.h.b16 %v2047
    %v2219 = vunpack.c.l.b16 %v2048
    %v2220 = vunpack.c.h.b16 %v2048
    %v2221 = vunpack.c.l.b16 %v2049
    %v2222 = vunpack.c.h.b16 %v2049
    %v2223 = vunpack.c.l.b16 %v2050
    %v2224 = vunpack.c.h.b16 %v2050
    %v2225 = vunpack.c.l.b16 %v2051
    %v2226 = vunpack.c.h.b16 %v2051
    %v2227 = vunpack.c.l.b16 %v2052
    %v2228 = vunpack.c.h.b16 %v2052
    %v2229 = vunpack.c.l.b16 %v2053
    %v2230 = vunpack.c.h.b16 %v2053
    %v2231 = vunpack.c.l.b16 %v2054
    %v2232 = vunpack.c.h.b16 %v2054
    %v2233 = vunpack.c.l.b16 %v2055
    %v2234 = vunpack.c.h.b16 %v2055
    %v2235 = vunpack.c.l.b16 %v2056
    %v2236 = vunpack.c.h.b16 %v2056
    %v2237 = vunpack.c.l.b16 %v2057
    %v2238 = vunpack.c.h.b16 %v2057
    %v2239 = vunpack.c.l.b16 %v2058
    %v2240 = vunpack.c.h.b16 %v2058
    %v2241 = vunpack.c.l.b16 %v2059
    %v2242 = vunpack.c.h.b16 %v2059
    %v2243 = vunpack.c.l.b16 %v2060
    %v2244 = vunpack.c.h.b16 %v2060
    %v2245 = vunpack.c.l.b16 %v2061
    %v2246 = vunpack.c.h.b16 %v2061
    %v2247 = vunpack.c.l.b16 %v2062
    %v2248 = vunpack.c.h.b16 %v2062
    %v2249 = vunpack.c.l.b16 %v2063
    %v2250 = vunpack.c.h.b16 %v2063
    %v2251 = vunpack.c.l.b16 %v2064
    %v2252 = vunpack.c.h.b16 %v2064
    %v2253 = vunpack.c.l.b16 %v2065
    %v2254 = vunpack.c.h.b16 %v2065
    %v2255 = vunpack.c.l.b16 %v2066
    %v2256 = vunpack.c.h.b16 %v2066
    %v2257 = vunpack.c.l.b16 %v2067
    %v2258 = vunpack.c.h.b16 %v2067
    %v2259 = vunpack.c.l.b16 %v2068
    %v2260 = vunpack.c.h.b16 %v2068
    %v2261 = vunpack.c.l.b16 %v2069
    %v2262 = vunpack.c.h.b16 %v2069
    %v2263 = vunpack.c.l.b16 %v2070
    %v2264 = vunpack.c.h.b16 %v2070
    %v2265 = vunpack.c.l.b16 %v2071
    %v2266 = vunpack.c.h.b16 %v2071
    %v2267 = vunpack.c.l.b16 %v2072
    %v2268 = vunpack.c.h.b16 %v2072
    %v2269 = vunpack.c.l.b16 %v2073
    %v2270 = vunpack.c.h.b16 %v2073
    %v2271 = vunpack.c.l.b16 %v2074
    %v2272 = vunpack.c.h.b16 %v2074
    %v2273 = vunpack.c.l.b16 %v2075
    %v2274 = vunpack.c.h.b16 %v2075
    %v2275 = vunpack.c.l.b16 %v2076
    %v2276 = vunpack.c.h.b16 %v2076
    %v2277 = vunpack.c.l.b16 %v2077
    %v2278 = vunpack.c.h.b16 %v2077
    %v2279 = vunpack.c.l.b16 %v2078
    %v2280 = vunpack.c.h.b16 %v2078
    %v2281 = vunpack.c.l.b16 %v2079
    %v2282 = vunpack.c.h.b16 %v2079
    %v2283 = vunpack.c.l.b16 %v2080
    %v2284 = vunpack.c.h.b16 %v2080
    %v2285 = vpack.c.b16 %v2159, %v2157
    %v2286 = vpack.c.b16 %v2160, %v2158
    %v2287 = vpack.c.b16 %v2163, %v2161
    %v2288 = vpack.c.b16 %v2164, %v2162
    %v2289 = vpack.c.b16 %v2167, %v2165
    %v2290 = vpack.c.b16 %v2168, %v2166
    %v2291 = vpack.c.b16 %v2171, %v2169
    %v2292 = vpack.c.b16 %v2172, %v2170
    %v2293 = vpack.c.b16 %v2175, %v2173
    %v2294 = vpack.c.b16 %v2176, %v2174
    %v2295 = vpack.c.b16 %v2179, %v2177
    %v2296 = vpack.c.b16 %v2180, %v2178
    %v2297 = vpack.c.b16 %v2183, %v2181
    %v2298 = vpack.c.b16 %v2184, %v2182
    %v2299 = vpack.c.b16 %v2187, %v2185
    %v2300 = vpack.c.b16 %v2188, %v2186
    %v2301 = vpack.c.b16 %v2191, %v2189
    %v2302 = vpack.c.b16 %v2192, %v2190
    %v2303 = vpack.c.b16 %v2195, %v2193
    %v2304 = vpack.c.b16 %v2196, %v2194
    %v2305 = vpack.c.b16 %v2199, %v2197
    %v2306 = vpack.c.b16 %v2200, %v2198
    %v2307 = vpack.c.b16 %v2203, %v2201
    %v2308 = vpack.c.b16 %v2204, %v2202
    %v2309 = vpack.c.b16 %v2207, %v2205
    %v2310 = vpack.c.b16 %v2208, %v2206
    %v2311 = vpack.c.b16 %v2211, %v2209
    %v2312 = vpack.c.b16 %v2212, %v2210
    %v2313 = vpack.c.b16 %v2215, %v2213
    %v2314 = vpack.c.b16 %v2216, %v2214
    %v2315 = vpack.c.b16 %v2219, %v2217
    %v2316 = vpack.c.b16 %v2220, %v2218
    %v2317 = vpack.c.b16 %v2223, %v2221
    %v2318 = vpack.c.b16 %v2224, %v2222
    %v2319 = vpack.c.b16 %v2227, %v2225
    %v2320 = vpack.c.b16 %v2228, %v2226
    %v2321 = vpack.c.b16 %v2231, %v2229
    %v2322 = vpack.c.b16 %v2232, %v2230
    %v2323 = vpack.c.b16 %v2235, %v2233
    %v2324 = vpack.c.b16 %v2236, %v2234
    %v2325 = vpack.c.b16 %v2239, %v2237
    %v2326 = vpack.c.b16 %v2240, %v2238
    %v2327 = vpack.c.b16 %v2243, %v2241
    %v2328 = vpack.c.b16 %v2244, %v2242
    %v2329 = vpack.c.b16 %v2247, %v2245
    %v2330 = vpack.c.b16 %v2248, %v2246
    %v2331 = vpack.c.b16 %v2251, %v2249
    %v2332 = vpack.c.b16 %v2252, %v2250
    %v2333 = vpack.c.b16 %v2255, %v2253
    %v2334 = vpack.c.b16 %v2256, %v2254
    %v2335 = vpack.c.b16 %v2259, %v2257
    %v2336 = vpack.c.b16 %v2260, %v2258
    %v2337 = vpack.c.b16 %v2263, %v2261
    %v2338 = vpack.c.b16 %v2264, %v2262
    %v2339 = vpack.c.b16 %v2267, %v2265
    %v2340 = vpack.c.b16 %v2268, %v2266
    %v2341 = vpack.c.b16 %v2271, %v2269
    %v2342 = vpack.c.b16 %v2272, %v2270
    %v2343 = vpack.c.b16 %v2275, %v2273
    %v2344 = vpack.c.b16 %v2276, %v2274
    %v2345 = vpack.c.b16 %v2279, %v2277
    %v2346 = vpack.c.b16 %v2280, %v2278
    %v2347 = vpack.c.b16 %v2283, %v2281
    %v2348 = vpack.c.b16 %v2284, %v2282
    %2413 = vmatprep.subr.bf16.mxu0 %v2286
    %2414 = vmatpush1.bf16.msra.mxu0 %v2285
    %2415 = vmatprep.subr.bf16.mxu0 %v2288
    %2416 = vmatpush1.bf16.msra.mxu0 %v2287
    %2417 = vmatprep.subr.bf16.mxu0 %v2290
    %2418 = vmatpush1.bf16.msra.mxu0 %v2289
    %2419 = vmatprep.subr.bf16.mxu0 %v2292
    %2420 = vmatpush1.bf16.msra.mxu0 %v2291
    %2421 = vmatprep.subr.bf16.mxu0 %v2294
    %2422 = vmatpush1.bf16.msra.mxu0 %v2293
    %2423 = vmatprep.subr.bf16.mxu0 %v2296
    %2424 = vmatpush1.bf16.msra.mxu0 %v2295
    %2425 = vmatprep.subr.bf16.mxu0 %v2298
    %2426 = vmatpush1.bf16.msra.mxu0 %v2297
    %2427 = vmatprep.subr.bf16.mxu0 %v2300
    %2428 = vmatpush1.bf16.msra.mxu0 %v2299
    %2429 = vmatprep.subr.bf16.mxu0 %v2302
    %2430 = vmatpush1.bf16.msra.mxu0 %v2301
    %2431 = vmatprep.subr.bf16.mxu0 %v2304
    %2432 = vmatpush1.bf16.msra.mxu0 %v2303
    %2433 = vmatprep.subr.bf16.mxu0 %v2306
    %2434 = vmatpush1.bf16.msra.mxu0 %v2305
    %2435 = vmatprep.subr.bf16.mxu0 %v2308
    %2436 = vmatpush1.bf16.msra.mxu0 %v2307
    %2437 = vmatprep.subr.bf16.mxu0 %v2310
    %2438 = vmatpush1.bf16.msra.mxu0 %v2309
    %2439 = vmatprep.subr.bf16.mxu0 %v2312
    %2440 = vmatpush1.bf16.msra.mxu0 %v2311
    %2441 = vmatprep.subr.bf16.mxu0 %v2314
    %2442 = vmatpush1.bf16.msra.mxu0 %v2313
    %2443 = vmatprep.subr.bf16.mxu0 %v2316
    %2444 = vmatpush1.bf16.msra.mxu0 %v2315
    %2445 = vmatprep.mubr.bf16.mxu0 %v2014
    %2446 = vmatmul.mubr.bf16.gmra.mrb[0].mxu0 %v2013
    %v2447 = vpop.f32.mrb[0].mxu0
    %v2448 = vadd.f32 %v2086, %v2447
    %v2449 = vpop.f32.mrb[0].mxu0
    %v2450 = vadd.f32 %v2090, %v2449
    %v2451 = vpop.f32.mrb[0].mxu0
    %v2452 = vpop.f32.mrb[0].mxu0
    %2453 = vdwg.mxu0
    %2454 = vmatprep.subr.bf16.mxu0 %v2318
    %2455 = vmatpush1.bf16.msra.mxu0 %v2317
    %2456 = vmatprep.subr.bf16.mxu0 %v2320
    %2457 = vmatpush1.bf16.msra.mxu0 %v2319
    %2458 = vmatprep.subr.bf16.mxu0 %v2322
    %2459 = vmatpush1.bf16.msra.mxu0 %v2321
    %2460 = vmatprep.subr.bf16.mxu0 %v2324
    %2461 = vmatpush1.bf16.msra.mxu0 %v2323
    %2462 = vmatprep.subr.bf16.mxu0 %v2326
    %2463 = vmatpush1.bf16.msra.mxu0 %v2325
    %2464 = vmatprep.subr.bf16.mxu0 %v2328
    %2465 = vmatpush1.bf16.msra.mxu0 %v2327
    %2466 = vmatprep.subr.bf16.mxu0 %v2330
    %2467 = vmatpush1.bf16.msra.mxu0 %v2329
    %2468 = vmatprep.subr.bf16.mxu0 %v2332
    %2469 = vmatpush1.bf16.msra.mxu0 %v2331
    %2470 = vmatprep.subr.bf16.mxu0 %v2334
    %2471 = vmatpush1.bf16.msra.mxu0 %v2333
    %2472 = vmatprep.subr.bf16.mxu0 %v2336
    %2473 = vmatpush1.bf16.msra.mxu0 %v2335
    %2474 = vmatprep.subr.bf16.mxu0 %v2338
    %2475 = vmatpush1.bf16.msra.mxu0 %v2337
    %2476 = vmatprep.subr.bf16.mxu0 %v2340
    %2477 = vmatpush1.bf16.msra.mxu0 %v2339
    %2478 = vmatprep.subr.bf16.mxu0 %v2342
    %2479 = vmatpush1.bf16.msra.mxu0 %v2341
    %2480 = vmatprep.subr.bf16.mxu0 %v2344
    %2481 = vmatpush1.bf16.msra.mxu0 %v2343
    %2482 = vmatprep.subr.bf16.mxu0 %v2346
    %2483 = vmatpush1.bf16.msra.mxu0 %v2345
    %2484 = vmatprep.subr.bf16.mxu0 %v2348
    %2485 = vmatpush1.bf16.msra.mxu0 %v2347
    %2486 = vmatprep.mubr.bf16.mxu0 %v2016
    %2487 = vmatmul.mubr.bf16.gmra.mrb[0].mxu0 %v2015
    %v2488 = vpop.f32.mrb[0].mxu0
    %v2489 = vadd.f32 %v2448, %v2488
    %v2490 = vpop.f32.mrb[0].mxu0
    %v2491 = vadd.f32 %v2450, %v2490
    %v2492 = vpop.f32.mrb[0].mxu0
    %v2493 = vpop.f32.mrb[0].mxu0
    %2494 = vdwg.mxu0
    %v2495 = vpack.c.bf16 %v2489, %v2489
    %v2496 = vpack.c.bf16 %v2491, %v2491
    %v2497 = vmax.bf16 %v2495, 0
    %v2498 = vmax.bf16 %v2496, 0
    %v2499 = vld [vmem:[#allocation8] sm:$0xf]
    %v2500 = vld [vmem:[#allocation8 + $0x4] sm:$0xf]
    %v2501 = vld [vmem:[#allocation8 + $0x8] sm:$0xf]
    %v2502 = vld [vmem:[#allocation8 + $0xc] sm:$0xf]
    %v2503 = vld [vmem:[#allocation8 + $0x10] sm:$0xf]
    %v2504 = vld [vmem:[#allocation8 + $0x14] sm:$0xf]
    %v2505 = vld [vmem:[#allocation8 + $0x18] sm:$0xf]
    %v2506 = vld [vmem:[#allocation8 + $0x1c] sm:$0xf]
    %v2507 = vld [vmem:[#allocation8 + $0x20] sm:$0xf]
    %v2508 = vld [vmem:[#allocation8 + $0x24] sm:$0xf]
    %v2509 = vld [vmem:[#allocation8 + $0x28] sm:$0xf]
    %v2510 = vld [vmem:[#allocation8 + $0x2c] sm:$0xf]
    %v2511 = vld [vmem:[#allocation8 + $0x30] sm:$0xf]
    %v2512 = vld [vmem:[#allocation8 + $0x34] sm:$0xf]
    %v2513 = vld [vmem:[#allocation8 + $0x38] sm:$0xf]
    %v2514 = vld [vmem:[#allocation8 + $0x3c] sm:$0xf]
    %v2515 = vld [vmem:[#allocation8 + $0x40] sm:$0xf]
    %v2516 = vld [vmem:[#allocation8 + $0x44] sm:$0xf]
    %v2517 = vld [vmem:[#allocation8 + $0x48] sm:$0xf]
    %v2518 = vld [vmem:[#allocation8 + $0x4c] sm:$0xf]
    %v2519 = vld [vmem:[#allocation8 + $0x50] sm:$0xf]
    %v2520 = vld [vmem:[#allocation8 + $0x54] sm:$0xf]
    %v2521 = vld [vmem:[#allocation8 + $0x58] sm:$0xf]
    %v2522 = vld [vmem:[#allocation8 + $0x5c] sm:$0xf]
    %v2523 = vld [vmem:[#allocation8 + $0x60] sm:$0xf]
    %v2524 = vld [vmem:[#allocation8 + $0x64] sm:$0xf]
    %v2525 = vld [vmem:[#allocation8 + $0x68] sm:$0xf]
    %v2526 = vld [vmem:[#allocation8 + $0x6c] sm:$0xf]
    %v2527 = vld [vmem:[#allocation8 + $0x70] sm:$0xf]
    %v2528 = vld [vmem:[#allocation8 + $0x74] sm:$0xf]
    %v2529 = vld [vmem:[#allocation8 + $0x78] sm:$0xf]
    %v2530 = vld [vmem:[#allocation8 + $0x7c] sm:$0xf]
    %v2531 = vld [vmem:[%s5 + $0x6] sm:$0x1]
    %v2533 = vlaneseq
    %v2534 = vshrl.u32 %v2533, 7
    %v2535 = vsub.s32 0, %v2534
    %v2536 = vrot.slane %v2531, %v2535
    %v2570 = vunpack.c.l.b16 %v2499
    %v2571 = vunpack.c.l.b16 %v2500
    %v2572 = vunpack.c.l.b16 %v2501
    %v2573 = vunpack.c.l.b16 %v2502
    %v2574 = vunpack.c.l.b16 %v2503
    %v2575 = vunpack.c.l.b16 %v2504
    %v2576 = vunpack.c.l.b16 %v2505
    %v2577 = vunpack.c.l.b16 %v2506
    %v2578 = vunpack.c.l.b16 %v2507
    %v2579 = vunpack.c.l.b16 %v2508
    %v2580 = vunpack.c.l.b16 %v2509
    %v2581 = vunpack.c.l.b16 %v2510
    %v2582 = vunpack.c.l.b16 %v2511
    %v2583 = vunpack.c.l.b16 %v2512
    %v2584 = vunpack.c.l.b16 %v2513
    %v2585 = vunpack.c.l.b16 %v2514
    %v2586 = vunpack.c.l.b16 %v2515
    %v2587 = vunpack.c.l.b16 %v2516
    %v2588 = vunpack.c.l.b16 %v2517
    %v2589 = vunpack.c.l.b16 %v2518
    %v2590 = vunpack.c.l.b16 %v2519
    %v2591 = vunpack.c.l.b16 %v2520
    %v2592 = vunpack.c.l.b16 %v2521
    %v2593 = vunpack.c.l.b16 %v2522
    %v2594 = vunpack.c.l.b16 %v2523
    %v2595 = vunpack.c.l.b16 %v2524
    %v2596 = vunpack.c.l.b16 %v2525
    %v2597 = vunpack.c.l.b16 %v2526
    %v2598 = vunpack.c.l.b16 %v2527
    %v2599 = vunpack.c.l.b16 %v2528
    %v2600 = vunpack.c.l.b16 %v2529
    %v2601 = vunpack.c.l.b16 %v2530
    %v2602 = vpack.c.b16 %v2571, %v2570
    %v2603 = vpack.c.b16 %v2573, %v2572
    %v2604 = vpack.c.b16 %v2575, %v2574
    %v2605 = vpack.c.b16 %v2577, %v2576
    %v2606 = vpack.c.b16 %v2579, %v2578
    %v2607 = vpack.c.b16 %v2581, %v2580
    %v2608 = vpack.c.b16 %v2583, %v2582
    %v2609 = vpack.c.b16 %v2585, %v2584
    %v2610 = vpack.c.b16 %v2587, %v2586
    %v2611 = vpack.c.b16 %v2589, %v2588
    %v2612 = vpack.c.b16 %v2591, %v2590
    %v2613 = vpack.c.b16 %v2593, %v2592
    %v2614 = vpack.c.b16 %v2595, %v2594
    %v2615 = vpack.c.b16 %v2597, %v2596
    %v2616 = vpack.c.b16 %v2599, %v2598
    %v2617 = vpack.c.b16 %v2601, %v2600
    %2634 = vmatprep.subr.bf16.mxu0 0
    %2635 = vmatpush1.bf16.msra.mxu0 %v2602
    %2636 = vmatprep.subr.bf16.mxu0 0
    %2637 = vmatpush1.bf16.msra.mxu0 %v2603
    %2638 = vmatprep.subr.bf16.mxu0 0
    %2639 = vmatpush1.bf16.msra.mxu0 %v2604
    %2640 = vmatprep.subr.bf16.mxu0 0
    %2641 = vmatpush1.bf16.msra.mxu0 %v2605
    %2642 = vmatprep.subr.bf16.mxu0 0
    %2643 = vmatpush1.bf16.msra.mxu0 %v2606
    %2644 = vmatprep.subr.bf16.mxu0 0
    %2645 = vmatpush1.bf16.msra.mxu0 %v2607
    %2646 = vmatprep.subr.bf16.mxu0 0
    %2647 = vmatpush1.bf16.msra.mxu0 %v2608
    %2648 = vmatprep.subr.bf16.mxu0 0
    %2649 = vmatpush1.bf16.msra.mxu0 %v2609
    %2650 = vmatprep.subr.bf16.mxu0 0
    %2651 = vmatpush1.bf16.msra.mxu0 %v2610
    %2652 = vmatprep.subr.bf16.mxu0 0
    %2653 = vmatpush1.bf16.msra.mxu0 %v2611
    %2654 = vmatprep.subr.bf16.mxu0 0
    %2655 = vmatpush1.bf16.msra.mxu0 %v2612
    %2656 = vmatprep.subr.bf16.mxu0 0
    %2657 = vmatpush1.bf16.msra.mxu0 %v2613
    %2658 = vmatprep.subr.bf16.mxu0 0
    %2659 = vmatpush1.bf16.msra.mxu0 %v2614
    %2660 = vmatprep.subr.bf16.mxu0 0
    %2661 = vmatpush1.bf16.msra.mxu0 %v2615
    %2662 = vmatprep.subr.bf16.mxu0 0
    %2663 = vmatpush1.bf16.msra.mxu0 %v2616
    %2664 = vmatprep.subr.bf16.mxu0 0
    %2665 = vmatpush1.bf16.msra.mxu0 %v2617
    %2666 = vmatprep.mubr.bf16.mxu0 %v2498
    %2667 = vmatmul.mubr.bf16.gmra.mrb[0].mxu0 %v2497
    %v2668 = vpop.f32.mrb[0].mxu0
    %v2669 = vadd.f32 %v2536, %v2668
    %v2670 = vpop.f32.mrb[0].mxu0
    %v2671 = vpop.f32.mrb[0].mxu0
    %v2672 = vpop.f32.mrb[0].mxu0
    %2673 = vdwg.mxu0
    %v2674 = vpack.c.bf16 %v2669, %v2669
    %v2675 = vmax.bf16 %v2674, 0
    %v2676 = vld [vmem:[#allocation10] sm:$0xf]
    %v2677 = vld [vmem:[#allocation10 + $0x4] sm:$0xf]
    %v2678 = vld [vmem:[#allocation10 + $0x8] sm:$0xf]
    %v2679 = vld [vmem:[#allocation10 + $0xc] sm:$0xf]
    %v2680 = vld [vmem:[#allocation10 + $0x10] sm:$0xf]
    %v2681 = vld [vmem:[#allocation10 + $0x14] sm:$0xf]
    %v2682 = vld [vmem:[#allocation10 + $0x18] sm:$0xf]
    %v2683 = vld [vmem:[#allocation10 + $0x1c] sm:$0xf]
    %v2684 = vld [vmem:[#allocation10 + $0x20] sm:$0xf]
    %v2685 = vld [vmem:[#allocation10 + $0x24] sm:$0xf]
    %v2686 = vld [vmem:[#allocation10 + $0x28] sm:$0xf]
    %v2687 = vld [vmem:[#allocation10 + $0x2c] sm:$0xf]
    %v2688 = vld [vmem:[#allocation10 + $0x30] sm:$0xf]
    %v2689 = vld [vmem:[#allocation10 + $0x34] sm:$0xf]
    %v2690 = vld [vmem:[#allocation10 + $0x38] sm:$0xf]
    %v2691 = vld [vmem:[#allocation10 + $0x3c] sm:$0xf]
    %v2692 = vld [vmem:[%s5 + $0x7] sm:$0x1]
    %v2694 = vlaneseq
    %v2695 = vshrl.u32 %v2694, 7
    %v2696 = vsub.s32 0, %v2695
    %v2697 = vrot.slane %v2692, %v2696
    %v2715 = vunpack.c.l.b16 %v2676
    %v2716 = vunpack.c.l.b16 %v2677
    %v2717 = vunpack.c.l.b16 %v2678
    %v2718 = vunpack.c.l.b16 %v2679
    %v2719 = vunpack.c.l.b16 %v2680
    %v2720 = vunpack.c.l.b16 %v2681
    %v2721 = vunpack.c.l.b16 %v2682
    %v2722 = vunpack.c.l.b16 %v2683
    %v2723 = vunpack.c.l.b16 %v2684
    %v2724 = vunpack.c.l.b16 %v2685
    %v2725 = vunpack.c.l.b16 %v2686
    %v2726 = vunpack.c.l.b16 %v2687
    %v2727 = vunpack.c.l.b16 %v2688
    %v2728 = vunpack.c.l.b16 %v2689
    %v2729 = vunpack.c.l.b16 %v2690
    %v2730 = vunpack.c.l.b16 %v2691
    %v2731 = vpack.c.b16 %v2716, %v2715
    %v2732 = vpack.c.b16 %v2718, %v2717
    %v2733 = vpack.c.b16 %v2720, %v2719
    %v2734 = vpack.c.b16 %v2722, %v2721
    %v2735 = vpack.c.b16 %v2724, %v2723
    %v2736 = vpack.c.b16 %v2726, %v2725
    %v2737 = vpack.c.b16 %v2728, %v2727
    %v2738 = vpack.c.b16 %v2730, %v2729
    %2747 = vmatprep.subr.bf16.mxu0 0
    %2748 = vmatpush1.bf16.msra.mxu0 %v2731
    %2749 = vmatprep.subr.bf16.mxu0 0
    %2750 = vmatpush1.bf16.msra.mxu0 %v2732
    %2751 = vmatprep.subr.bf16.mxu0 0
    %2752 = vmatpush1.bf16.msra.mxu0 %v2733
    %2753 = vmatprep.subr.bf16.mxu0 0
    %2754 = vmatpush1.bf16.msra.mxu0 %v2734
    %2755 = vmatprep.subr.bf16.mxu0 0
    %2756 = vmatpush1.bf16.msra.mxu0 %v2735
    %2757 = vmatprep.subr.bf16.mxu0 0
    %2758 = vmatpush1.bf16.msra.mxu0 %v2736
    %2759 = vmatprep.subr.bf16.mxu0 0
    %2760 = vmatpush1.bf16.msra.mxu0 %v2737
    %2761 = vmatprep.subr.bf16.mxu0 0
    %2762 = vmatpush1.bf16.msra.mxu0 %v2738
    %2763 = vmatprep.subr.bf16.mxu0 0
    %2764 = vmatpush1.bf16.msra.mxu0 0
    %2765 = vmatprep.subr.bf16.mxu0 0
    %2766 = vmatpush1.bf16.msra.mxu0 0
    %2767 = vmatprep.subr.bf16.mxu0 0
    %2768 = vmatpush1.bf16.msra.mxu0 0
    %2769 = vmatprep.subr.bf16.mxu0 0
    %2770 = vmatpush1.bf16.msra.mxu0 0
    %2771 = vmatprep.subr.bf16.mxu0 0
    %2772 = vmatpush1.bf16.msra.mxu0 0
    %2773 = vmatprep.subr.bf16.mxu0 0
    %2774 = vmatpush1.bf16.msra.mxu0 0
    %2775 = vmatprep.subr.bf16.mxu0 0
    %2776 = vmatpush1.bf16.msra.mxu0 0
    %2777 = vmatprep.subr.bf16.mxu0 0
    %2778 = vmatpush1.bf16.msra.mxu0 0
    %2779 = vmatprep.mubr.bf16.mxu0 0
    %2780 = vmatmul.mubr.bf16.gmra.mrb[0].mxu0 %v2675
    %v2781 = vpop.f32.mrb[0].mxu0
    %v2782 = vadd.f32 %v2697, %v2781
    %v2783 = vpop.f32.mrb[0].mxu0
    %v2784 = vpop.f32.mrb[0].mxu0
    %v2785 = vpop.f32.mrb[0].mxu0
    %2786 = vdwg.mxu0
    %2787 = vst [vmem:[#allocation11] sm:$0xff] %v2782
    // Predicated region
    $region46: #{tpu_custom_call.1} parent=1 // pred_check
      _
    $region47: #{tpu_custom_call.1} parent=1 // pred_check_branch
      %2789 = sbr.rel (0) target = $region49
    $region48: #{tpu_custom_call.1} parent=1 // pred_region
      %s2791 = ssub.s32 128, 128
      %2792 = vsyncadd [#allocation4], %s2791
      %s2794 = sshll.u32 [#allocation11], 4
      %s2795 = int_to_ptr.vmem [resolvable:$true] %s2794
      %2797 = dma.vmem_to_hbm [thread:$0]  %s2795, 128, %s6, [#allocation4]
    $region49: #{tpu_custom_call.1} parent=1 // pred_fallthru
      _
    // Predicated region
    $region50: #{tpu_custom_call.1} parent=1 // pred_check
      _
    $region51: #{tpu_custom_call.1} parent=1 // pred_check_branch
      %2799 = sbr.rel (0) target = $region53
    $region52: #{tpu_custom_call.1} parent=1 // pred_region
      %2800 = dma.done [#allocation4], 128
    $region53: #{tpu_custom_call.1} parent=1 // pred_fallthru
      _
    %2801 = vsyncpa [#allocation3], 1
    %2802 = vsyncpa [#allocation6], 1
    %2803 = vsyncpa [#allocation9], 1
    %2804 = vsyncpa [#allocation4], 1

</llo_original>
